<compile_context>
chip_gen: v7x
topology: tpu7x:2x2x1
jax: 0.10.0
libtpu: 0.0.40
codegen_flags: <defaults>
</compile_context>

<pallas_src>
import functools

import jax
import jax.numpy as jnp
from jax.experimental import pallas as pl
from jax.experimental.pallas import tpu as pltpu

NEG_SLOPE = 0.2   # LeakyReLU negative slope ('lrelu' in get_non_linearity)
LN_EPS = 1e-5     # torch.nn.LayerNorm default eps


# ---------------------------------------------------------------------------
# Fused per-sample kernel
# ---------------------------------------------------------------------------
def _res_block_kernel(x_ref, idx_ref, w1_ref, w2_ref, w3_ref, *rest,
                      H, W, stride, use_conv_shortcut):
    """Whole ResidualBlock forward for one sample.

    Activations are (C, H*W) with H*W in the lane dimension.
      x_ref   : (Cin, H*W)       input sample
      idx_ref : (2, H*W) int32   row 0 = p % W (column), row 1 = p // W (row)
      w1_ref  : (Cm, Cin)        conv1 1x1
      w2_ref  : (9, Cm, Cm)      conv2 3x3, tap-major (t = kh*3 + kw), [o, i]
      w3_ref  : (Cout, Cm)       conv3 1x1
      rest    : [w4_ref] (only if conv shortcut) + [sel_ref] (only if stride!=1)
                + o_ref
        w4_ref  : (Cout, Cin)    conv4 1x1 shortcut
        sel_ref : (H*W, Ho*Wo)   one-hot stride-subsampling matrix
        o_ref   : (Cout, Ho*Wo)
    """
    rest = list(rest)
    w4_ref = rest.pop(0) if use_conv_shortcut else None
    sel_ref = rest.pop(0) if stride != 1 else None
    (o_ref,) = rest

    HW = H * W
    f32 = jnp.float32

    x = x_ref[...].astype(f32)                      # (Cin, HW)
    wcol = idx_ref[0:1, :]                          # (1, HW) column of each lane
    hrow = idx_ref[1:2, :]                          # (1, HW) row of each lane

    # Boundary masks, hoisted once and reused by every tap.
    w_first = wcol == 0
    w_last = wcol == W - 1
    h_first = hrow == 0
    h_last = hrow == H - 1

    def ln_lrelu(a):
        # LayerNorm([C, H, W], elementwise_affine=False): normalize over the
        # whole sample (biased variance, eps=1e-5), then LeakyReLU(0.2).
        mean = jnp.mean(a)
        var = jnp.mean(jnp.square(a - mean))
        y = (a - mean) * jax.lax.rsqrt(var + LN_EPS)
        return jnp.maximum(y, NEG_SLOPE * y)        # LeakyReLU as a single max

    # One tiny probe of pltpu.roll's rotation convention.  Both rotation
    # directions of every shift are needed anyway (reflect handling), so the
    # convention is resolved with 2 cheap VPU selects per shift pair — no
    # duplicated XLU rolls (old version rolled everything twice).
    lane_iota = jax.lax.broadcasted_iota(jnp.int32, (1, HW), 1)
    probe = pltpu.roll(lane_iota, 1, axis=1)
    rolls_like_np = probe[0:1, 0:1] == (HW - 1)     # (1, 1) bool

    def shift_pair(v, d):
        # Returns (minus, plus) with minus[..., p] = v[..., p-d] and
        # plus[..., p] = v[..., p+d]  (circular), independent of convention.
        ra = pltpu.roll(v, d, axis=1)
        rb = pltpu.roll(v, HW - d, axis=1)
        minus = jnp.where(rolls_like_np, ra, rb)
        plus = jnp.where(rolls_like_np, rb, ra)
        return minus, plus

    # ---- bn1 + lrelu -------------------------------------------------------
    out1 = ln_lrelu(x)                               # (Cin, HW)

    # ---- conv1 (1x1): (Cm, HW) = W1 @ out1 ----------------------------------
    h = jnp.dot(w1_ref[...], out1, preferred_element_type=f32)

    # ---- bn2 + lrelu -------------------------------------------------------
    h = ln_lrelu(h)                                  # (Cm, HW)

    # ---- conv2 (3x3, reflect pad 1): 9 in-VMEM reflect-shifted taps ---------
    left, right = shift_pair(h, 1)                   # values at (r, c-1) / (r, c+1)
    w_shift = {
        -1: jnp.where(w_first, right, left),         # reflect at w == 0
        0: h,
        +1: jnp.where(w_last, left, right),          # reflect at w == W-1
    }
    h2 = None
    for dw in (-1, 0, 1):
        b = w_shift[dw]
        up, down = shift_pair(b, W)                  # values at (r-1, c) / (r+1, c)
        h_shift = {
            -1: jnp.where(h_first, down, up),        # reflect at h == 0
            0: b,
            +1: jnp.where(h_last, up, down),         # reflect at h == H-1
        }
        for dh in (-1, 0, 1):
            t = (dh + 1) * 3 + (dw + 1)              # kh * 3 + kw
            term = jnp.dot(w2_ref[t], h_shift[dh], preferred_element_type=f32)
            h2 = term if h2 is None else h2 + term
    if stride != 1:
        h2 = jnp.dot(h2, sel_ref[...], preferred_element_type=f32)   # (Cm, HoWo)

    # ---- bn3 + lrelu -------------------------------------------------------
    h2 = ln_lrelu(h2)

    # ---- conv3 (1x1) + residual ---------------------------------------------
    out = jnp.dot(w3_ref[...], h2, preferred_element_type=f32)        # (Cout, HoWo)
    if use_conv_shortcut:
        res_in = out1
        if stride != 1:
            # Subsample first (Cin rows) — cheaper than after w4 (Cout rows).
            res_in = jnp.dot(res_in, sel_ref[...], preferred_element_type=f32)
        out = out + jnp.dot(w4_ref[...], res_in, preferred_element_type=f32)
    else:
        out = out + x                                 # identity shortcut (pre-norm x)
    o_ref[...] = out.astype(o_ref.dtype)


# ---------------------------------------------------------------------------
# Wrapper (layout plumbing only; all FLOPs run inside the fused kernel)
# ---------------------------------------------------------------------------
def residual_block(x_nchw, params, input_channels, output_channels, stride=1):
    """Forward pass of ResidualBlock. x_nchw: (N, Cin, H, W), NCHW like torch."""
    n, cin, h, w = x_nchw.shape
    assert cin == input_channels
    assert output_channels % 4 == 0
    cout = output_channels
    cm = cout // 4
    hw = h * w
    ho = (h - 1) // stride + 1     # == (h + 2*1 - 3)//stride + 1
    wo = (w - 1) // stride + 1
    howo = ho * wo
    use_conv_shortcut = (cin != cout) or (stride != 1)

    # Layout plumbing (pure reshapes/transposes, free at the XLA level).
    x2 = x_nchw.reshape(n, cin, hw).astype(jnp.float32)
    w1m = params["w1"].reshape(cm, cin)
    w2m = jnp.transpose(params["w2"], (2, 3, 0, 1)).reshape(9, cm, cm)  # t=kh*3+kw
    w3m = params["w3"].reshape(cout, cm)

    p = jnp.arange(hw, dtype=jnp.int32)
    lane_idx = jnp.stack([p % w, p // w], axis=0)    # (2, HW): col / row per lane

    inputs = [x2, lane_idx, w1m, w2m, w3m]
    in_specs = [
        pl.BlockSpec((None, cin, hw), lambda i: (i, 0, 0)),   # per-sample, lane-dense
        pl.BlockSpec((2, hw), lambda i: (0, 0)),              # constants: loaded once
        pl.BlockSpec((cm, cin), lambda i: (0, 0)),
        pl.BlockSpec((9, cm, cm), lambda i: (0, 0, 0)),
        pl.BlockSpec((cout, cm), lambda i: (0, 0)),
    ]
    if use_conv_shortcut:
        # Only ship the shortcut weight when the conv shortcut is actually used.
        inputs.append(params["w4"].reshape(cout, cin))
        in_specs.append(pl.BlockSpec((cout, cin), lambda i: (0, 0)))
    if stride != 1:
        # One-hot subsampling matrix folded into the kernel (replaces XLA-side
        # strided slicing of the activations).
        keep = (jnp.arange(ho) * stride)[:, None] * w + (jnp.arange(wo) * stride)[None, :]
        sel = (jnp.arange(hw, dtype=jnp.int32)[:, None] == keep.reshape(1, -1)
               ).astype(jnp.float32)                          # (HW, HoWo)
        inputs.append(sel)
        in_specs.append(pl.BlockSpec((hw, howo), lambda i: (0, 0)))

    kernel = functools.partial(
        _res_block_kernel, H=h, W=w, stride=stride,
        use_conv_shortcut=use_conv_shortcut)

    y = pl.pallas_call(
        kernel,
        out_shape=jax.ShapeDtypeStruct((n, cout, howo), jnp.float32),
        grid=(n,),
        in_specs=in_specs,
        out_specs=pl.BlockSpec((None, cout, howo), lambda i: (i, 0, 0)),
        compiler_params=pltpu.CompilerParams(
            dimension_semantics=("parallel",)),               # v7x: 2 TCs share batch
    )(*inputs)
    return y.reshape(n, cout, ho, wo)


# ---------------------------------------------------------------------------
# Synthetic weights (torch OIHW layout, no bias) and a pure-JAX reference
# ---------------------------------------------------------------------------
def init_params(key, input_channels, output_channels):
    cm = output_channels // 4
    k1, k2, k3, k4 = jax.random.split(key, 4)

    def u(k, shape, fan_in):
        bound = 1.0 / jnp.sqrt(jnp.float32(fan_in))
        return jax.random.uniform(k, shape, jnp.float32, -bound, bound)

    return {
        "w1": u(k1, (cm, input_channels, 1, 1), input_channels),
        "w2": u(k2, (cm, cm, 3, 3), 9 * cm),
        "w3": u(k3, (output_channels, cm, 1, 1), cm),
        "w4": u(k4, (output_channels, input_channels, 1, 1), input_channels),
    }


def reference_forward(x, params, input_channels, output_channels, stride=1):
    """Pure-JAX (non-Pallas) reference of the torch module, NCHW."""
    dn = ("NCHW", "OIHW", "NCHW")
    hp = jax.lax.Precision.HIGHEST

    def conv(t, wgt, s):
        return jax.lax.conv_general_dilated(
            t, wgt, (s, s), "VALID", dimension_numbers=dn, precision=hp)

    def ln_lrelu(t):
        m = jnp.mean(t, axis=(1, 2, 3), keepdims=True)
        v = jnp.mean(jnp.square(t - m), axis=(1, 2, 3), keepdims=True)
        y = (t - m) * jax.lax.rsqrt(v + LN_EPS)
        return jnp.where(y >= 0, y, NEG_SLOPE * y)

    out1 = ln_lrelu(x)
    out = conv(out1, params["w1"], 1)
    out = ln_lrelu(out)
    outp = jnp.pad(out, ((0, 0), (0, 0), (1, 1), (1, 1)), mode="reflect")
    out = conv(outp, params["w2"], stride)
    out = ln_lrelu(out)
    out = conv(out, params["w3"], 1)
    if input_channels != output_channels or stride != 1:
        residual = conv(out1, params["w4"], stride)
    else:
        residual = x
    return out + residual


if __name__ == "__main__":
    N, Cin, Cout, H, W = 2, 4, 8, 16, 16
    stride = 1

    key = jax.random.PRNGKey(0)
    kx, kp = jax.random.split(key)
    x = jax.random.normal(kx, (N, Cin, H, W), jnp.float32)    # NCHW, like torch
    params = init_params(kp, Cin, Cout)

    fwd = jax.jit(functools.partial(
        residual_block, input_channels=Cin, output_channels=Cout, stride=stride))
    y = fwd(x, params)
    jax.block_until_ready(y)
    assert y.shape == (N, Cout, H, W)
    assert bool(jnp.all(jnp.isfinite(y))), "non-finite output"

    # Numerical check against the pure-JAX reference of the torch module.
    y_ref = reference_forward(x, params, Cin, Cout, stride)
    err = float(jnp.max(jnp.abs(y - y_ref)))
    assert err < 5e-2, f"kernel/reference mismatch: max abs err = {err}"
    print("KERNEL_OK")
</pallas_src>

<mosaic_0001>
module attributes {stable_mosaic.version = 11 : i64} {
  func.func @_res_block_kernel(%arg0: i32, %arg1: memref<1x4x256xf32, #tpu.memory_space<vmem>>, %arg2: memref<2x256xi32, #tpu.memory_space<vmem>>, %arg3: memref<2x4xf32, #tpu.memory_space<vmem>>, %arg4: memref<9x2x2xf32, #tpu.memory_space<vmem>>, %arg5: memref<8x2xf32, #tpu.memory_space<vmem>>, %arg6: memref<8x4xf32, #tpu.memory_space<vmem>>, %arg7: memref<1x8x256xf32, #tpu.memory_space<vmem>>) attributes {dimension_semantics = [#tpu.dimension_semantics<parallel>], iteration_bounds = array<i64: 2>, scalar_prefetch = 0 : i64, scratch_operands = 0 : i64, tpu.core_type = #tpu.core_type<tc>, window_params = [{transform_indices = @transform_0, window_bounds = array<i64: 1, 4, 256>}, {pipeline_mode = #tpu.pipeline_mode<synchronous>, transform_indices = @transform_1, window_bounds = array<i64: 2, 256>}, {pipeline_mode = #tpu.pipeline_mode<synchronous>, transform_indices = @transform_2, window_bounds = array<i64: 2, 4>}, {pipeline_mode = #tpu.pipeline_mode<synchronous>, transform_indices = @transform_3, window_bounds = array<i64: 9, 2, 2>}, {pipeline_mode = #tpu.pipeline_mode<synchronous>, transform_indices = @transform_4, window_bounds = array<i64: 8, 2>}, {pipeline_mode = #tpu.pipeline_mode<synchronous>, transform_indices = @transform_5, window_bounds = array<i64: 8, 4>}, {transform_indices = @transform_6, window_bounds = array<i64: 1, 8, 256>}]} {
    %c0 = arith.constant 0 : index
    %c0_0 = arith.constant 0 : index
    %c0_1 = arith.constant 0 : index
    %0 = vector.load %arg1[%c0, %c0_0, %c0_1] : memref<1x4x256xf32, #tpu.memory_space<vmem>>, vector<1x4x256xf32>
    %1 = vector.shape_cast %0 : vector<1x4x256xf32> to vector<4x256xf32>
    %c0_2 = arith.constant 0 : index
    %c0_3 = arith.constant 0 : index
    %2 = vector.load %arg2[%c0_2, %c0_3] : memref<2x256xi32, #tpu.memory_space<vmem>>, vector<1x256xi32>
    %c1 = arith.constant 1 : index
    %c0_4 = arith.constant 0 : index
    %3 = vector.load %arg2[%c1, %c0_4] : memref<2x256xi32, #tpu.memory_space<vmem>>, vector<1x256xi32>
    %c0_i32 = arith.constant 0 : i32
    %4 = vector.broadcast %c0_i32 : i32 to vector<1x256xi32>
    %5 = arith.cmpi eq, %2, %4 : vector<1x256xi32>
    %c15_i32 = arith.constant 15 : i32
    %6 = vector.broadcast %c15_i32 : i32 to vector<1x256xi32>
    %7 = arith.cmpi eq, %2, %6 : vector<1x256xi32>
    %c0_i32_5 = arith.constant 0 : i32
    %8 = vector.broadcast %c0_i32_5 : i32 to vector<1x256xi32>
    %9 = arith.cmpi eq, %3, %8 : vector<1x256xi32>
    %c15_i32_6 = arith.constant 15 : i32
    %10 = vector.broadcast %c15_i32_6 : i32 to vector<1x256xi32>
    %11 = arith.cmpi eq, %3, %10 : vector<1x256xi32>
    %12 = tpu.iota {dimensions = array<i32: 1>} : vector<1x256xi32>
    %c1_i32 = arith.constant 1 : i32
    %13 = tpu.dynamic_rotate %12 by %c1_i32 dim 1 : vector<1x256xi32>, i32 -> vector<1x256xi32>
    %14 = vector.extract_strided_slice %13 {offsets = [0, 0], sizes = [1, 1], strides = [1, 1]} : vector<1x256xi32> to vector<1x1xi32>
    %c255_i32 = arith.constant 255 : i32
    %15 = vector.broadcast %c255_i32 : i32 to vector<1x1xi32>
    %16 = arith.cmpi eq, %14, %15 : vector<1x1xi32>
    %17 = vector.shape_cast %1 : vector<4x256xf32> to vector<1x4x256xf32>
    %cst = arith.constant dense<0.000000e+00> : vector<1xf32>
    %18 = vector.multi_reduction <add>, %17, %cst [1, 2] : vector<1x4x256xf32> to vector<1xf32>
    %19 = vector.shape_cast %18 : vector<1xf32> to vector<1x1x1xf32>
    %20 = vector.extract %19[0, 0, 0] : f32 from vector<1x1x1xf32>
    %cst_7 = arith.constant 1.024000e+03 : f32
    %21 = arith.divf %20, %cst_7 : f32
    %22 = vector.broadcast %21 : f32 to vector<4x256xf32>
    %23 = arith.subf %1, %22 : vector<4x256xf32>
    %24 = arith.mulf %23, %23 : vector<4x256xf32>
    %25 = vector.shape_cast %24 : vector<4x256xf32> to vector<1x4x256xf32>
    %cst_8 = arith.constant dense<0.000000e+00> : vector<1xf32>
    %26 = vector.multi_reduction <add>, %25, %cst_8 [1, 2] : vector<1x4x256xf32> to vector<1xf32>
    %27 = vector.shape_cast %26 : vector<1xf32> to vector<1x1x1xf32>
    %28 = vector.extract %27[0, 0, 0] : f32 from vector<1x1x1xf32>
    %cst_9 = arith.constant 1.024000e+03 : f32
    %29 = arith.divf %28, %cst_9 : f32
    %30 = vector.broadcast %21 : f32 to vector<4x256xf32>
    %31 = arith.subf %1, %30 : vector<4x256xf32>
    %cst_10 = arith.constant 9.99999974E-6 : f32
    %32 = arith.addf %29, %cst_10 : f32
    %33 = math.rsqrt %32 : f32
    %34 = vector.broadcast %33 : f32 to vector<4x256xf32>
    %35 = arith.mulf %31, %34 : vector<4x256xf32>
    %cst_11 = arith.constant 2.000000e-01 : f32
    %36 = vector.broadcast %cst_11 : f32 to vector<4x256xf32>
    %37 = arith.mulf %36, %35 : vector<4x256xf32>
    %38 = arith.maximumf %35, %37 : vector<4x256xf32>
    %c0_12 = arith.constant 0 : index
    %c0_13 = arith.constant 0 : index
    %39 = vector.load %arg3[%c0_12, %c0_13] : memref<2x4xf32, #tpu.memory_space<vmem>>, vector<2x4xf32>
    %cst_14 = arith.constant dense<0.000000e+00> : vector<2x256xf32>
    %40 = tpu.matmul %39, %38, %cst_14 {dimension_numbers = #tpu.dot_dimension_numbers<[1], [0], [0], [1], [0, 0, 1, 1], [], []>} : vector<2x4xf32>, vector<4x256xf32>, vector<2x256xf32> -> vector<2x256xf32>
    %41 = vector.shape_cast %40 : vector<2x256xf32> to vector<1x2x256xf32>
    %cst_15 = arith.constant dense<0.000000e+00> : vector<1xf32>
    %42 = vector.multi_reduction <add>, %41, %cst_15 [1, 2] : vector<1x2x256xf32> to vector<1xf32>
    %43 = vector.shape_cast %42 : vector<1xf32> to vector<1x1x1xf32>
    %44 = vector.extract %43[0, 0, 0] : f32 from vector<1x1x1xf32>
    %cst_16 = arith.constant 5.120000e+02 : f32
    %45 = arith.divf %44, %cst_16 : f32
    %46 = vector.broadcast %45 : f32 to vector<2x256xf32>
    %47 = arith.subf %40, %46 : vector<2x256xf32>
    %48 = arith.mulf %47, %47 : vector<2x256xf32>
    %49 = vector.shape_cast %48 : vector<2x256xf32> to vector<1x2x256xf32>
    %cst_17 = arith.constant dense<0.000000e+00> : vector<1xf32>
    %50 = vector.multi_reduction <add>, %49, %cst_17 [1, 2] : vector<1x2x256xf32> to vector<1xf32>
    %51 = vector.shape_cast %50 : vector<1xf32> to vector<1x1x1xf32>
    %52 = vector.extract %51[0, 0, 0] : f32 from vector<1x1x1xf32>
    %cst_18 = arith.constant 5.120000e+02 : f32
    %53 = arith.divf %52, %cst_18 : f32
    %54 = vector.broadcast %45 : f32 to vector<2x256xf32>
    %55 = arith.subf %40, %54 : vector<2x256xf32>
    %cst_19 = arith.constant 9.99999974E-6 : f32
    %56 = arith.addf %53, %cst_19 : f32
    %57 = math.rsqrt %56 : f32
    %58 = vector.broadcast %57 : f32 to vector<2x256xf32>
    %59 = arith.mulf %55, %58 : vector<2x256xf32>
    %cst_20 = arith.constant 2.000000e-01 : f32
    %60 = vector.broadcast %cst_20 : f32 to vector<2x256xf32>
    %61 = arith.mulf %60, %59 : vector<2x256xf32>
    %62 = arith.maximumf %59, %61 : vector<2x256xf32>
    %c1_i32_21 = arith.constant 1 : i32
    %63 = tpu.dynamic_rotate %62 by %c1_i32_21 dim 1 : vector<2x256xf32>, i32 -> vector<2x256xf32>
    %c255_i32_22 = arith.constant 255 : i32
    %64 = tpu.dynamic_rotate %62 by %c255_i32_22 dim 1 : vector<2x256xf32>, i32 -> vector<2x256xf32>
    %65 = vector.shape_cast %16 : vector<1x1xi1> to vector<1x1xi1>
    %66 = vector.broadcast %65 : vector<1x1xi1> to vector<2x256xi1>
    %67 = arith.select %66, %63, %64 : vector<2x256xi1>, vector<2x256xf32>
    %68 = vector.shape_cast %16 : vector<1x1xi1> to vector<1x1xi1>
    %69 = vector.broadcast %68 : vector<1x1xi1> to vector<2x256xi1>
    %70 = arith.select %69, %64, %63 : vector<2x256xi1>, vector<2x256xf32>
    %71 = vector.shape_cast %5 : vector<1x256xi1> to vector<1x256xi1>
    %72 = vector.broadcast %71 : vector<1x256xi1> to vector<2x256xi1>
    %73 = arith.select %72, %70, %67 : vector<2x256xi1>, vector<2x256xf32>
    %74 = vector.shape_cast %7 : vector<1x256xi1> to vector<1x256xi1>
    %75 = vector.broadcast %74 : vector<1x256xi1> to vector<2x256xi1>
    %76 = arith.select %75, %67, %70 : vector<2x256xi1>, vector<2x256xf32>
    %c16_i32 = arith.constant 16 : i32
    %77 = tpu.dynamic_rotate %73 by %c16_i32 dim 1 : vector<2x256xf32>, i32 -> vector<2x256xf32>
    %c240_i32 = arith.constant 240 : i32
    %78 = tpu.dynamic_rotate %73 by %c240_i32 dim 1 : vector<2x256xf32>, i32 -> vector<2x256xf32>
    %79 = vector.shape_cast %16 : vector<1x1xi1> to vector<1x1xi1>
    %80 = vector.broadcast %79 : vector<1x1xi1> to vector<2x256xi1>
    %81 = arith.select %80, %77, %78 : vector<2x256xi1>, vector<2x256xf32>
    %82 = vector.shape_cast %16 : vector<1x1xi1> to vector<1x1xi1>
    %83 = vector.broadcast %82 : vector<1x1xi1> to vector<2x256xi1>
    %84 = arith.select %83, %78, %77 : vector<2x256xi1>, vector<2x256xf32>
    %85 = vector.shape_cast %9 : vector<1x256xi1> to vector<1x256xi1>
    %86 = vector.broadcast %85 : vector<1x256xi1> to vector<2x256xi1>
    %87 = arith.select %86, %84, %81 : vector<2x256xi1>, vector<2x256xf32>
    %88 = vector.shape_cast %11 : vector<1x256xi1> to vector<1x256xi1>
    %89 = vector.broadcast %88 : vector<1x256xi1> to vector<2x256xi1>
    %90 = arith.select %89, %81, %84 : vector<2x256xi1>, vector<2x256xf32>
    %c0_23 = arith.constant 0 : index
    %c0_24 = arith.constant 0 : index
    %c0_25 = arith.constant 0 : index
    %91 = vector.load %arg4[%c0_23, %c0_24, %c0_25] : memref<9x2x2xf32, #tpu.memory_space<vmem>>, vector<1x2x2xf32>
    %92 = vector.shape_cast %91 : vector<1x2x2xf32> to vector<2x2xf32>
    %cst_26 = arith.constant dense<0.000000e+00> : vector<2x256xf32>
    %93 = tpu.matmul %92, %87, %cst_26 {dimension_numbers = #tpu.dot_dimension_numbers<[1], [0], [0], [1], [0, 0, 1, 1], [], []>} : vector<2x2xf32>, vector<2x256xf32>, vector<2x256xf32> -> vector<2x256xf32>
    %c3 = arith.constant 3 : index
    %c0_27 = arith.constant 0 : index
    %c0_28 = arith.constant 0 : index
    %94 = vector.load %arg4[%c3, %c0_27, %c0_28] : memref<9x2x2xf32, #tpu.memory_space<vmem>>, vector<1x2x2xf32>
    %95 = vector.shape_cast %94 : vector<1x2x2xf32> to vector<2x2xf32>
    %cst_29 = arith.constant dense<0.000000e+00> : vector<2x256xf32>
    %96 = tpu.matmul %95, %73, %cst_29 {dimension_numbers = #tpu.dot_dimension_numbers<[1], [0], [0], [1], [0, 0, 1, 1], [], []>} : vector<2x2xf32>, vector<2x256xf32>, vector<2x256xf32> -> vector<2x256xf32>
    %97 = arith.addf %93, %96 : vector<2x256xf32>
    %c6 = arith.constant 6 : index
    %c0_30 = arith.constant 0 : index
    %c0_31 = arith.constant 0 : index
    %98 = vector.load %arg4[%c6, %c0_30, %c0_31] : memref<9x2x2xf32, #tpu.memory_space<vmem>>, vector<1x2x2xf32>
    %99 = vector.shape_cast %98 : vector<1x2x2xf32> to vector<2x2xf32>
    %cst_32 = arith.constant dense<0.000000e+00> : vector<2x256xf32>
    %100 = tpu.matmul %99, %90, %cst_32 {dimension_numbers = #tpu.dot_dimension_numbers<[1], [0], [0], [1], [0, 0, 1, 1], [], []>} : vector<2x2xf32>, vector<2x256xf32>, vector<2x256xf32> -> vector<2x256xf32>
    %101 = arith.addf %97, %100 : vector<2x256xf32>
    %c16_i32_33 = arith.constant 16 : i32
    %102 = tpu.dynamic_rotate %62 by %c16_i32_33 dim 1 : vector<2x256xf32>, i32 -> vector<2x256xf32>
    %c240_i32_34 = arith.constant 240 : i32
    %103 = tpu.dynamic_rotate %62 by %c240_i32_34 dim 1 : vector<2x256xf32>, i32 -> vector<2x256xf32>
    %104 = vector.shape_cast %16 : vector<1x1xi1> to vector<1x1xi1>
    %105 = vector.broadcast %104 : vector<1x1xi1> to vector<2x256xi1>
    %106 = arith.select %105, %102, %103 : vector<2x256xi1>, vector<2x256xf32>
    %107 = vector.shape_cast %16 : vector<1x1xi1> to vector<1x1xi1>
    %108 = vector.broadcast %107 : vector<1x1xi1> to vector<2x256xi1>
    %109 = arith.select %108, %103, %102 : vector<2x256xi1>, vector<2x256xf32>
    %110 = vector.shape_cast %9 : vector<1x256xi1> to vector<1x256xi1>
    %111 = vector.broadcast %110 : vector<1x256xi1> to vector<2x256xi1>
    %112 = arith.select %111, %109, %106 : vector<2x256xi1>, vector<2x256xf32>
    %113 = vector.shape_cast %11 : vector<1x256xi1> to vector<1x256xi1>
    %114 = vector.broadcast %113 : vector<1x256xi1> to vector<2x256xi1>
    %115 = arith.select %114, %106, %109 : vector<2x256xi1>, vector<2x256xf32>
    %c1_35 = arith.constant 1 : index
    %c0_36 = arith.constant 0 : index
    %c0_37 = arith.constant 0 : index
    %116 = vector.load %arg4[%c1_35, %c0_36, %c0_37] : memref<9x2x2xf32, #tpu.memory_space<vmem>>, vector<1x2x2xf32>
    %117 = vector.shape_cast %116 : vector<1x2x2xf32> to vector<2x2xf32>
    %cst_38 = arith.constant dense<0.000000e+00> : vector<2x256xf32>
    %118 = tpu.matmul %117, %112, %cst_38 {dimension_numbers = #tpu.dot_dimension_numbers<[1], [0], [0], [1], [0, 0, 1, 1], [], []>} : vector<2x2xf32>, vector<2x256xf32>, vector<2x256xf32> -> vector<2x256xf32>
    %119 = arith.addf %101, %118 : vector<2x256xf32>
    %c4 = arith.constant 4 : index
    %c0_39 = arith.constant 0 : index
    %c0_40 = arith.constant 0 : index
    %120 = vector.load %arg4[%c4, %c0_39, %c0_40] : memref<9x2x2xf32, #tpu.memory_space<vmem>>, vector<1x2x2xf32>
    %121 = vector.shape_cast %120 : vector<1x2x2xf32> to vector<2x2xf32>
    %cst_41 = arith.constant dense<0.000000e+00> : vector<2x256xf32>
    %122 = tpu.matmul %121, %62, %cst_41 {dimension_numbers = #tpu.dot_dimension_numbers<[1], [0], [0], [1], [0, 0, 1, 1], [], []>} : vector<2x2xf32>, vector<2x256xf32>, vector<2x256xf32> -> vector<2x256xf32>
    %123 = arith.addf %119, %122 : vector<2x256xf32>
    %c7 = arith.constant 7 : index
    %c0_42 = arith.constant 0 : index
    %c0_43 = arith.constant 0 : index
    %124 = vector.load %arg4[%c7, %c0_42, %c0_43] : memref<9x2x2xf32, #tpu.memory_space<vmem>>, vector<1x2x2xf32>
    %125 = vector.shape_cast %124 : vector<1x2x2xf32> to vector<2x2xf32>
    %cst_44 = arith.constant dense<0.000000e+00> : vector<2x256xf32>
    %126 = tpu.matmul %125, %115, %cst_44 {dimension_numbers = #tpu.dot_dimension_numbers<[1], [0], [0], [1], [0, 0, 1, 1], [], []>} : vector<2x2xf32>, vector<2x256xf32>, vector<2x256xf32> -> vector<2x256xf32>
    %127 = arith.addf %123, %126 : vector<2x256xf32>
    %c16_i32_45 = arith.constant 16 : i32
    %128 = tpu.dynamic_rotate %76 by %c16_i32_45 dim 1 : vector<2x256xf32>, i32 -> vector<2x256xf32>
    %c240_i32_46 = arith.constant 240 : i32
    %129 = tpu.dynamic_rotate %76 by %c240_i32_46 dim 1 : vector<2x256xf32>, i32 -> vector<2x256xf32>
    %130 = vector.shape_cast %16 : vector<1x1xi1> to vector<1x1xi1>
    %131 = vector.broadcast %130 : vector<1x1xi1> to vector<2x256xi1>
    %132 = arith.select %131, %128, %129 : vector<2x256xi1>, vector<2x256xf32>
    %133 = vector.shape_cast %16 : vector<1x1xi1> to vector<1x1xi1>
    %134 = vector.broadcast %133 : vector<1x1xi1> to vector<2x256xi1>
    %135 = arith.select %134, %129, %128 : vector<2x256xi1>, vector<2x256xf32>
    %136 = vector.shape_cast %9 : vector<1x256xi1> to vector<1x256xi1>
    %137 = vector.broadcast %136 : vector<1x256xi1> to vector<2x256xi1>
    %138 = arith.select %137, %135, %132 : vector<2x256xi1>, vector<2x256xf32>
    %139 = vector.shape_cast %11 : vector<1x256xi1> to vector<1x256xi1>
    %140 = vector.broadcast %139 : vector<1x256xi1> to vector<2x256xi1>
    %141 = arith.select %140, %132, %135 : vector<2x256xi1>, vector<2x256xf32>
    %c2 = arith.constant 2 : index
    %c0_47 = arith.constant 0 : index
    %c0_48 = arith.constant 0 : index
    %142 = vector.load %arg4[%c2, %c0_47, %c0_48] : memref<9x2x2xf32, #tpu.memory_space<vmem>>, vector<1x2x2xf32>
    %143 = vector.shape_cast %142 : vector<1x2x2xf32> to vector<2x2xf32>
    %cst_49 = arith.constant dense<0.000000e+00> : vector<2x256xf32>
    %144 = tpu.matmul %143, %138, %cst_49 {dimension_numbers = #tpu.dot_dimension_numbers<[1], [0], [0], [1], [0, 0, 1, 1], [], []>} : vector<2x2xf32>, vector<2x256xf32>, vector<2x256xf32> -> vector<2x256xf32>
    %145 = arith.addf %127, %144 : vector<2x256xf32>
    %c5 = arith.constant 5 : index
    %c0_50 = arith.constant 0 : index
    %c0_51 = arith.constant 0 : index
    %146 = vector.load %arg4[%c5, %c0_50, %c0_51] : memref<9x2x2xf32, #tpu.memory_space<vmem>>, vector<1x2x2xf32>
    %147 = vector.shape_cast %146 : vector<1x2x2xf32> to vector<2x2xf32>
    %cst_52 = arith.constant dense<0.000000e+00> : vector<2x256xf32>
    %148 = tpu.matmul %147, %76, %cst_52 {dimension_numbers = #tpu.dot_dimension_numbers<[1], [0], [0], [1], [0, 0, 1, 1], [], []>} : vector<2x2xf32>, vector<2x256xf32>, vector<2x256xf32> -> vector<2x256xf32>
    %149 = arith.addf %145, %148 : vector<2x256xf32>
    %c8 = arith.constant 8 : index
    %c0_53 = arith.constant 0 : index
    %c0_54 = arith.constant 0 : index
    %150 = vector.load %arg4[%c8, %c0_53, %c0_54] : memref<9x2x2xf32, #tpu.memory_space<vmem>>, vector<1x2x2xf32>
    %151 = vector.shape_cast %150 : vector<1x2x2xf32> to vector<2x2xf32>
    %cst_55 = arith.constant dense<0.000000e+00> : vector<2x256xf32>
    %152 = tpu.matmul %151, %141, %cst_55 {dimension_numbers = #tpu.dot_dimension_numbers<[1], [0], [0], [1], [0, 0, 1, 1], [], []>} : vector<2x2xf32>, vector<2x256xf32>, vector<2x256xf32> -> vector<2x256xf32>
    %153 = arith.addf %149, %152 : vector<2x256xf32>
    %154 = vector.shape_cast %153 : vector<2x256xf32> to vector<1x2x256xf32>
    %cst_56 = arith.constant dense<0.000000e+00> : vector<1xf32>
    %155 = vector.multi_reduction <add>, %154, %cst_56 [1, 2] : vector<1x2x256xf32> to vector<1xf32>
    %156 = vector.shape_cast %155 : vector<1xf32> to vector<1x1x1xf32>
    %157 = vector.extract %156[0, 0, 0] : f32 from vector<1x1x1xf32>
    %cst_57 = arith.constant 5.120000e+02 : f32
    %158 = arith.divf %157, %cst_57 : f32
    %159 = vector.broadcast %158 : f32 to vector<2x256xf32>
    %160 = arith.subf %153, %159 : vector<2x256xf32>
    %161 = arith.mulf %160, %160 : vector<2x256xf32>
    %162 = vector.shape_cast %161 : vector<2x256xf32> to vector<1x2x256xf32>
    %cst_58 = arith.constant dense<0.000000e+00> : vector<1xf32>
    %163 = vector.multi_reduction <add>, %162, %cst_58 [1, 2] : vector<1x2x256xf32> to vector<1xf32>
    %164 = vector.shape_cast %163 : vector<1xf32> to vector<1x1x1xf32>
    %165 = vector.extract %164[0, 0, 0] : f32 from vector<1x1x1xf32>
    %cst_59 = arith.constant 5.120000e+02 : f32
    %166 = arith.divf %165, %cst_59 : f32
    %167 = vector.broadcast %158 : f32 to vector<2x256xf32>
    %168 = arith.subf %153, %167 : vector<2x256xf32>
    %cst_60 = arith.constant 9.99999974E-6 : f32
    %169 = arith.addf %166, %cst_60 : f32
    %170 = math.rsqrt %169 : f32
    %171 = vector.broadcast %170 : f32 to vector<2x256xf32>
    %172 = arith.mulf %168, %171 : vector<2x256xf32>
    %cst_61 = arith.constant 2.000000e-01 : f32
    %173 = vector.broadcast %cst_61 : f32 to vector<2x256xf32>
    %174 = arith.mulf %173, %172 : vector<2x256xf32>
    %175 = arith.maximumf %172, %174 : vector<2x256xf32>
    %c0_62 = arith.constant 0 : index
    %c0_63 = arith.constant 0 : index
    %176 = vector.load %arg5[%c0_62, %c0_63] : memref<8x2xf32, #tpu.memory_space<vmem>>, vector<8x2xf32>
    %cst_64 = arith.constant dense<0.000000e+00> : vector<8x256xf32>
    %177 = tpu.matmul %176, %175, %cst_64 {dimension_numbers = #tpu.dot_dimension_numbers<[1], [0], [0], [1], [0, 0, 1, 1], [], []>} : vector<8x2xf32>, vector<2x256xf32>, vector<8x256xf32> -> vector<8x256xf32>
    %c0_65 = arith.constant 0 : index
    %c0_66 = arith.constant 0 : index
    %178 = vector.load %arg6[%c0_65, %c0_66] : memref<8x4xf32, #tpu.memory_space<vmem>>, vector<8x4xf32>
    %cst_67 = arith.constant dense<0.000000e+00> : vector<8x256xf32>
    %179 = tpu.matmul %178, %38, %cst_67 {dimension_numbers = #tpu.dot_dimension_numbers<[1], [0], [0], [1], [0, 0, 1, 1], [], []>} : vector<8x4xf32>, vector<4x256xf32>, vector<8x256xf32> -> vector<8x256xf32>
    %180 = arith.addf %177, %179 : vector<8x256xf32>
    %c0_68 = arith.constant 0 : index
    %c0_69 = arith.constant 0 : index
    %c0_70 = arith.constant 0 : index
    %181 = vector.load %arg7[%c0_68, %c0_69, %c0_70] : memref<1x8x256xf32, #tpu.memory_space<vmem>>, vector<1x8x256xf32>
    %182 = vector.shape_cast %181 : vector<1x8x256xf32> to vector<8x256xf32>
    %183 = vector.shape_cast %180 : vector<8x256xf32> to vector<1x8x256xf32>
    tpu.vector_store %arg7[%c0_68, %c0_69, %c0_70], %183 {strides = array<i32>} : memref<1x8x256xf32, #tpu.memory_space<vmem>>, vector<1x8x256xf32>,
    return
  }
  func.func @transform_0(%arg0: i32) -> (i32, i32, i32) {
    %c0_i32 = arith.constant 0 : i32
    %c0_i32_0 = arith.constant 0 : i32
    %c0_i32_1 = arith.constant 0 : i32
    return %arg0, %c0_i32, %c0_i32_0 : i32, i32, i32
  }
  func.func @transform_1(%arg0: i32) -> (i32, i32) {
    %c0_i32 = arith.constant 0 : i32
    %c0_i32_0 = arith.constant 0 : i32
    %c0_i32_1 = arith.constant 0 : i32
    return %c0_i32, %c0_i32_0 : i32, i32
  }
  func.func @transform_2(%arg0: i32) -> (i32, i32) {
    %c0_i32 = arith.constant 0 : i32
    %c0_i32_0 = arith.constant 0 : i32
    %c0_i32_1 = arith.constant 0 : i32
    return %c0_i32, %c0_i32_0 : i32, i32
  }
  func.func @transform_3(%arg0: i32) -> (i32, i32, i32) {
    %c0_i32 = arith.constant 0 : i32
    %c0_i32_0 = arith.constant 0 : i32
    %c0_i32_1 = arith.constant 0 : i32
    %c0_i32_2 = arith.constant 0 : i32
    return %c0_i32, %c0_i32_0, %c0_i32_1 : i32, i32, i32
  }
  func.func @transform_4(%arg0: i32) -> (i32, i32) {
    %c0_i32 = arith.constant 0 : i32
    %c0_i32_0 = arith.constant 0 : i32
    %c0_i32_1 = arith.constant 0 : i32
    return %c0_i32, %c0_i32_0 : i32, i32
  }
  func.func @transform_5(%arg0: i32) -> (i32, i32) {
    %c0_i32 = arith.constant 0 : i32
    %c0_i32_0 = arith.constant 0 : i32
    %c0_i32_1 = arith.constant 0 : i32
    return %c0_i32, %c0_i32_0 : i32, i32
  }
  func.func @transform_6(%arg0: i32) -> (i32, i32, i32) {
    %c0_i32 = arith.constant 0 : i32
    %c0_i32_0 = arith.constant 0 : i32
    %c0_i32_1 = arith.constant 0 : i32
    return %arg0, %c0_i32, %c0_i32_0 : i32, i32, i32
  }
}

</mosaic_0001>

<llo_original>
// kernel: residual_block.1
$region0: #{residual_block.1}
  #allocation0 [shape = 'u32[]', space=smem, size = 0x4, offset = 0x4, fixed_abs, tag = 'smem constant byte address 0x4 - core index']
  #allocation1 [shape = 'u32[144,128]{1,0:T(1,128)}', space=vmem, size = 0x12000, scoped, tag = 'internal scratch']
  %s0 = inlined_call_operand.vmem [shape: f32[2,4,256], index: 0, kind: input, shape index: {}]
  %s1 = inlined_call_operand.vmem [shape: s32[2,256], index: 1, kind: input, shape index: {}]
  %s2 = inlined_call_operand.vmem [shape: f32[2,4], index: 2, kind: input, shape index: {}]
  %s3 = inlined_call_operand.vmem [shape: f32[9,2,2], index: 3, kind: input, shape index: {}]
  %s4 = inlined_call_operand.vmem [shape: f32[8,2], index: 4, kind: input, shape index: {}]
  %s5 = inlined_call_operand.vmem [shape: f32[8,4], index: 5, kind: input, shape index: {}]
  %s6 = inlined_call_operand.vmem [shape: f32[2,8,256], index: 6, kind: output, shape index: {}]
  %s7 = sld [smem:[#allocation0]]
  $region57: #{residual_block.1} parent=0
    _
  %s9 = ssub.s32 1, %s7
  %s10 = scalar_select 0, %s9, %s7
  loop: start=0, step=1, limit=4
  $region2: #{residual_block.1} parent=0 // loop_pre_header
    _
  $region3: #{residual_block.1} parent=0 // loop_header
    %s12 = sphi 0, %s16
    %p13 = scmp.ge.s32.totalorder %s12, 4
    %s22 = sphi 0, %s24
    %s25 = sphi 0, %s22
    %s26 = sphi 0, %s25
    %s42 = sphi 0, %s26
    %s46 = sphi 0, %s46
    %s48 = sphi 0, %s46
    %s49 = sphi 0, %s48
    %s63 = sphi 0, %s49
    %s67 = sphi 0, %s67
    %s69 = sphi 0, %s67
    %s70 = sphi 0, %s69
    %s84 = sphi 0, %s70
    %s88 = sphi 0, %s88
    %s90 = sphi 0, %s88
    %s91 = sphi 0, %s90
    %s105 = sphi 0, %s91
    %s109 = sphi 0, %s109
    %s111 = sphi 0, %s109
    %s112 = sphi 0, %s111
    %s126 = sphi 0, %s112
    %s130 = sphi 0, %s130
    %s132 = sphi 0, %s130
    %s133 = sphi 0, %s132
    %s147 = sphi 0, %s133
    %s153 = sphi 0, %s155
    %s156 = sphi 0, %s153
    %s157 = sphi 0, %s156
    %s173 = sphi 0, %s157
  $region4: #{residual_block.1} parent=0 // loop_header_branch
    %15 = sbr.rel (%p13) target = $region8
  $region5: #{residual_block.1} parent=0 // loop_body
    %s17 = ssub.s32 %s12, 1
    %s18 = ssub.s32 %s12, 2
    %s19 = sadd.s32 %s12, 1
    %s20 = ssub.s32 %s12, %s19
    %p21 = scmp.eq.s32.totalorder %s20, 0
    %s23 = sadd.s32 %s22, 1
    %s24 = scalar_select %p21, %s22, %s23
    %p27 = pneg %p21
    %p28 = scmp.eq.s32.totalorder %s12, 1
    %p29 = por %p27, %p28
    %p30 = scmp.ne.s32.totalorder %s22, %s25
    %p31 = scmp.eq.s32.totalorder %s12, 0
    %p32 = por %p30, %p31
    %p33 = scmp.ne.s32.totalorder %s22, %s25
    %p34 = scmp.eq.s32.totalorder %s17, 1
    %p35 = por %p33, %p34
    %p36 = scmp.ne.s32.totalorder %s25, %s26
    %p37 = scmp.eq.s32.totalorder %s17, 0
    %p38 = por %p36, %p37
    %p39 = scmp.ne.s32.totalorder %s25, %s26
    %p40 = scmp.eq.s32.totalorder %s18, 1
    %p41 = por %p39, %p40
    %p43 = scmp.ne.s32.totalorder %s26, %s42
    %p44 = scmp.eq.s32.totalorder %s18, 0
    %p45 = por %p43, %p44
    %s47 = sadd.s32 %s46, 1
    %p50 = scmp.eq.s32.totalorder %s12, 1
    %p51 = scmp.ne.s32.totalorder %s46, %s48
    %p52 = scmp.eq.s32.totalorder %s12, 0
    %p53 = por %p51, %p52
    %p54 = scmp.ne.s32.totalorder %s46, %s48
    %p55 = scmp.eq.s32.totalorder %s17, 1
    %p56 = por %p54, %p55
    %p57 = scmp.ne.s32.totalorder %s48, %s49
    %p58 = scmp.eq.s32.totalorder %s17, 0
    %p59 = por %p57, %p58
    %p60 = scmp.ne.s32.totalorder %s48, %s49
    %p61 = scmp.eq.s32.totalorder %s18, 1
    %p62 = por %p60, %p61
    %p64 = scmp.ne.s32.totalorder %s49, %s63
    %p65 = scmp.eq.s32.totalorder %s18, 0
    %p66 = por %p64, %p65
    %s68 = sadd.s32 %s67, 1
    %p71 = scmp.eq.s32.totalorder %s12, 1
    %p72 = scmp.ne.s32.totalorder %s67, %s69
    %p73 = scmp.eq.s32.totalorder %s12, 0
    %p74 = por %p72, %p73
    %p75 = scmp.ne.s32.totalorder %s67, %s69
    %p76 = scmp.eq.s32.totalorder %s17, 1
    %p77 = por %p75, %p76
    %p78 = scmp.ne.s32.totalorder %s69, %s70
    %p79 = scmp.eq.s32.totalorder %s17, 0
    %p80 = por %p78, %p79
    %p81 = scmp.ne.s32.totalorder %s69, %s70
    %p82 = scmp.eq.s32.totalorder %s18, 1
    %p83 = por %p81, %p82
    %p85 = scmp.ne.s32.totalorder %s70, %s84
    %p86 = scmp.eq.s32.totalorder %s18, 0
    %p87 = por %p85, %p86
    %s89 = sadd.s32 %s88, 1
    %p92 = scmp.eq.s32.totalorder %s12, 1
    %p93 = scmp.ne.s32.totalorder %s88, %s90
    %p94 = scmp.eq.s32.totalorder %s12, 0
    %p95 = por %p93, %p94
    %p96 = scmp.ne.s32.totalorder %s88, %s90
    %p97 = scmp.eq.s32.totalorder %s17, 1
    %p98 = por %p96, %p97
    %p99 = scmp.ne.s32.totalorder %s90, %s91
    %p100 = scmp.eq.s32.totalorder %s17, 0
    %p101 = por %p99, %p100
    %p102 = scmp.ne.s32.totalorder %s90, %s91
    %p103 = scmp.eq.s32.totalorder %s18, 1
    %p104 = por %p102, %p103
    %p106 = scmp.ne.s32.totalorder %s91, %s105
    %p107 = scmp.eq.s32.totalorder %s18, 0
    %p108 = por %p106, %p107
    %s110 = sadd.s32 %s109, 1
    %p113 = scmp.eq.s32.totalorder %s12, 1
    %p114 = scmp.ne.s32.totalorder %s109, %s111
    %p115 = scmp.eq.s32.totalorder %s12, 0
    %p116 = por %p114, %p115
    %p117 = scmp.ne.s32.totalorder %s109, %s111
    %p118 = scmp.eq.s32.totalorder %s17, 1
    %p119 = por %p117, %p118
    %p120 = scmp.ne.s32.totalorder %s111, %s112
    %p121 = scmp.eq.s32.totalorder %s17, 0
    %p122 = por %p120, %p121
    %p123 = scmp.ne.s32.totalorder %s111, %s112
    %p124 = scmp.eq.s32.totalorder %s18, 1
    %p125 = por %p123, %p124
    %p127 = scmp.ne.s32.totalorder %s112, %s126
    %p128 = scmp.eq.s32.totalorder %s18, 0
    %p129 = por %p127, %p128
    %s131 = sadd.s32 %s130, 1
    %p134 = scmp.eq.s32.totalorder %s12, 1
    %p135 = scmp.ne.s32.totalorder %s130, %s132
    %p136 = scmp.eq.s32.totalorder %s12, 0
    %p137 = por %p135, %p136
    %p138 = scmp.ne.s32.totalorder %s130, %s132
    %p139 = scmp.eq.s32.totalorder %s17, 1
    %p140 = por %p138, %p139
    %p141 = scmp.ne.s32.totalorder %s132, %s133
    %p142 = scmp.eq.s32.totalorder %s17, 0
    %p143 = por %p141, %p142
    %p144 = scmp.ne.s32.totalorder %s132, %s133
    %p145 = scmp.eq.s32.totalorder %s18, 1
    %p146 = por %p144, %p145
    %p148 = scmp.ne.s32.totalorder %s133, %s147
    %p149 = scmp.eq.s32.totalorder %s18, 0
    %p150 = por %p148, %p149
    %s151 = ssub.s32 %s12, %s19
    %p152 = scmp.eq.s32.totalorder %s151, 0
    %s154 = sadd.s32 %s153, 1
    %s155 = scalar_select %p152, %s153, %s154
    %p158 = pneg %p152
    %p159 = scmp.eq.s32.totalorder %s12, 1
    %p160 = por %p158, %p159
    %p161 = scmp.ne.s32.totalorder %s153, %s156
    %p162 = scmp.eq.s32.totalorder %s12, 0
    %p163 = por %p161, %p162
    %p164 = scmp.ne.s32.totalorder %s153, %s156
    %p165 = scmp.eq.s32.totalorder %s17, 1
    %p166 = por %p164, %p165
    %p167 = scmp.ne.s32.totalorder %s156, %s157
    %p168 = scmp.eq.s32.totalorder %s17, 0
    %p169 = por %p167, %p168
    %p170 = scmp.ne.s32.totalorder %s156, %s157
    %p171 = scmp.eq.s32.totalorder %s18, 1
    %p172 = por %p170, %p171
    %p174 = scmp.ne.s32.totalorder %s157, %s173
    %p175 = scmp.eq.s32.totalorder %s18, 0
    %p176 = por %p174, %p175
    %p177 = scmp.le.s32.totalorder 1, %s12
    %p178 = scmp.lt.s32.totalorder %s12, 3
    %p179 = pnand %p177, %p178
    %p180 = pneg %p179
    // Predicated region
    $region9: #{residual_block.1} parent=5 // pred_check
      _
    $region10: #{residual_block.1} parent=5 // pred_check_branch
      %182 = sbr.rel (%p179) target = $region12
    $region11: #{residual_block.1} parent=5 // pred_region
      %s183 = ssub.s32 %s12, 1
      // Predicated region
      $region13: #{residual_block.1} parent=11 // pred_check
        %p184 = pneg %p59
      $region14: #{residual_block.1} parent=11 // pred_check_branch
        %186 = sbr.rel (%p184) target = $region16
      $region15: #{residual_block.1} parent=11 // pred_region
        _
      $region16: #{residual_block.1} parent=11 // pred_fallthru
        _
      // Predicated region
      $region17: #{residual_block.1} parent=11 // pred_check
        %p187 = pneg %p80
      $region18: #{residual_block.1} parent=11 // pred_check_branch
        %189 = sbr.rel (%p187) target = $region20
      $region19: #{residual_block.1} parent=11 // pred_region
        _
      $region20: #{residual_block.1} parent=11 // pred_fallthru
        _
      // Predicated region
      $region21: #{residual_block.1} parent=11 // pred_check
        %p190 = pneg %p101
      $region22: #{residual_block.1} parent=11 // pred_check_branch
        %192 = sbr.rel (%p190) target = $region24
      $region23: #{residual_block.1} parent=11 // pred_region
        _
      $region24: #{residual_block.1} parent=11 // pred_fallthru
        _
      // Predicated region
      $region25: #{residual_block.1} parent=11 // pred_check
        %p193 = pneg %p122
      $region26: #{residual_block.1} parent=11 // pred_check_branch
        %195 = sbr.rel (%p193) target = $region28
      $region27: #{residual_block.1} parent=11 // pred_region
        _
      $region28: #{residual_block.1} parent=11 // pred_fallthru
        _
      // Predicated region
      $region29: #{residual_block.1} parent=11 // pred_check
        %p196 = pneg %p143
      $region30: #{residual_block.1} parent=11 // pred_check_branch
        %198 = sbr.rel (%p196) target = $region32
      $region31: #{residual_block.1} parent=11 // pred_region
        _
      $region32: #{residual_block.1} parent=11 // pred_fallthru
        _
    $region12: #{residual_block.1} parent=5 // pred_fallthru
      _
    %p199 = scmp.lt.s32.totalorder %s12, 2
    // Predicated region
    $region33: #{residual_block.1} parent=5 // pred_check
      %p200 = pneg %p199
    $region34: #{residual_block.1} parent=5 // pred_check_branch
      %202 = sbr.rel (%p200) target = $region36
    $region35: #{residual_block.1} parent=5 // pred_region
      // Predicated region
      $region37: #{residual_block.1} parent=35 // pred_check
        %p203 = pneg %p32
      $region38: #{residual_block.1} parent=35 // pred_check_branch
        %205 = sbr.rel (%p203) target = $region40
      $region39: #{residual_block.1} parent=35 // pred_region
        %p206 = scmp.lt.s32.totalorder %s12, 1
        %s207 = scalar_select %p206, %s12, 1
        %s208 = smul.addr %s207, 2
        %s209 = smul.addr %s208, 4
        %s210 = scalar_lea.vmem %s0, %s209
      $region40: #{residual_block.1} parent=35 // pred_fallthru
        _
    $region36: #{residual_block.1} parent=5 // pred_fallthru
      _
    %p211 = scmp.le.s32.totalorder 1, %s12
    %p212 = scmp.lt.s32.totalorder %s12, 3
    %p213 = pnand %p211, %p212
    %p214 = pneg %p213
    // Predicated region
    $region41: #{residual_block.1} parent=5 // pred_check
      _
    $region42: #{residual_block.1} parent=5 // pred_check_branch
      %216 = sbr.rel (%p213) target = $region44
    $region43: #{residual_block.1} parent=5 // pred_region
      %s217 = ssub.s32 %s12, 1
      %p218 = scmp.lt.s32.totalorder %s17, 1
      %s219 = scalar_select %p218, %s17, 1
      %s220 = smul.addr %s219, 2
      %s221 = smul.addr %s220, 4
      %s222 = scalar_lea.vmem %s0, %s221
      %p223 = pneg %p38
      %p224 = pneg %p35
      %p225 = pneg %p59
      %p226 = pneg %p56
      %p227 = pneg %p80
      %p228 = pneg %p77
      %p229 = pneg %p101
      %p230 = pneg %p98
      %p231 = pneg %p122
      %p232 = pneg %p119
      %p233 = pneg %p143
      %p234 = pneg %p140
      %p235 = pneg %p169
      %p236 = pneg %p166
      %p237 = scmp.lt.s32.totalorder %s17, 1
      %s238 = scalar_select %p237, %s17, 1
      %s239 = smul.addr %s238, 2
      %s240 = smul.addr %s239, 8
      %s241 = scalar_lea.vmem %s6, %s240
      %p242 = scmp.lt.s32.totalorder %s17, 1
      %s243 = scalar_select %p242, %s17, 1
      %s244 = smul.addr %s243, 2
      %s245 = smul.addr %s244, 4
      %s246 = scalar_lea.vmem %s0, %s245
      %p247 = scmp.lt.s32.totalorder %s17, 1
      %s248 = scalar_select %p247, %s17, 1
      %s249 = smul.addr %s248, 2
      %s250 = smul.addr %s249, 8
      %s251 = scalar_lea.vmem %s6, %s250
      %v252 = vld [vmem:[%s246] sm:$0xff]
      %v253 = vld [vmem:[%s1] ss:$2 sm:$0x3]
      %s254 = scalar_lea.vmem %s1, 1
      %v255 = vld [vmem:[%s254] ss:$2 sm:$0x3]
      %vm256 = vcmp.eq.s32.totalorder %v253, 0
      %vm257 = vcmp.eq.s32.totalorder %v253, 15
      %vm258 = vcmp.eq.s32.totalorder %v255, 0
      %vm259 = vcmp.eq.s32.totalorder %v255, 15
      %v260 = vlaneseq
      %v261 = vand.u32 %v260, 127
      %v262 = vadd.s32 %v261, 128
      %263 = vrot.lane.b32.xlu0 %v261, 1
      %v264 = vpop.permute.xlu0 %263
      %265 = vrot.lane.b32.xlu0 %v262, 1
      %v266 = vpop.permute.xlu0 %265
      %vm267 = vcmp.lt.s32.totalorder %v261, 1
      %v268 = vsel %vm267, %v266, %v264
      %vm269 = vcmp.eq.s32.totalorder %v268, 255
      %v271 = vcombine.high %v252, %v252
      %vm273 = vcmask 1043456
      %v274 = vsel %vm273, %v252, 0.0
      %v275 = vsel %vm273, %v271, 0.0
      %v276 = vadd.f32 %v274, %v275
      %277 = vadd.xlane.f32.xlu0 %v276
      %v278 = vpop.xlane.xlu0 %277
      %v279 = vrot.slane %v278, 4
      %v280 = vadd.f32 %v278, %v279
      %v281 = vrot.slane %v280, 2
      %v282 = vadd.f32 %v280, %v281
      %v283 = vrot.slane %v282, 1
      %v284 = vadd.f32 %v282, %v283
      %s285 = vtos %v284
      %v286 = vrcp.pop 1024.0
      %s287 = vtos %v286
      %s288 = smul.f32 %s285, %s287
      %v289 = vstv %s288
      %v290 = vsub.f32 %v252, %v289
      %v291 = vmul.f32 %v290, %v290
      %v293 = vcombine.high %v291, %v291
      %v295 = vsel %vm273, %v291, 0.0
      %v296 = vsel %vm273, %v293, 0.0
      %v297 = vadd.f32 %v295, %v296
      %298 = vadd.xlane.f32.xlu0 %v297
      %v299 = vpop.xlane.xlu0 %298
      %v300 = vrot.slane %v299, 4
      %v301 = vadd.f32 %v299, %v300
      %v302 = vrot.slane %v301, 2
      %v303 = vadd.f32 %v301, %v302
      %v304 = vrot.slane %v303, 1
      %v305 = vadd.f32 %v303, %v304
      %s306 = vtos %v305
      %v307 = vrcp.pop 1024.0
      %s308 = vtos %v307
      %s309 = smul.f32 %s306, %s308
      %s310 = sadd.f32 %s309, 1e-05
      %v311 = vstv %s310
      %v312 = vrsqrt.pop %v311
      %s313 = vtos %v312
      %v314 = vstv %s313
      %v315 = vmul.f32 %v290, %v314
      %v316 = vmul.f32 %v315, 0.2
      %v317 = vmax.f32 %v315, %v316
      %v318 = vld [vmem:[%s2] sm:$0x3]
      %v320 = vcombine.high %v317, %v317
      %vm321 = vcmask 31744
      %v323 = vsel %vm321, %v318, 0
      %v325 = vsel %vm273, %v317, 0
      %v327 = vsel %vm273, %v320, 0
      %329 = vmatprep.subr.mxu0 %v327
      %330 = vmatpush1.msra.mxu0 %v325
      %331 = vmatprep.subr.mxu0 0.0
      %332 = vmatpush1.msra.mxu0 0.0
      %333 = vmatprep.subr.mxu0 0.0
      %334 = vmatpush1.msra.mxu0 0.0
      %335 = vmatprep.subr.mxu0 0.0
      %336 = vmatpush1.msra.mxu0 0.0
      %337 = vmatprep.subr.mxu0 0.0
      %338 = vmatpush1.msra.mxu0 0.0
      %339 = vmatprep.subr.mxu0 0.0
      %340 = vmatpush1.msra.mxu0 0.0
      %341 = vmatprep.subr.mxu0 0.0
      %342 = vmatpush1.msra.mxu0 0.0
      %343 = vmatprep.subr.mxu0 0.0
      %344 = vmatpush1.msra.mxu0 0.0
      %345 = vmatprep.subr.mxu0 0.0
      %346 = vmatpush1.msra.mxu0 0.0
      %347 = vmatprep.subr.mxu0 0.0
      %348 = vmatpush1.msra.mxu0 0.0
      %349 = vmatprep.subr.mxu0 0.0
      %350 = vmatpush1.msra.mxu0 0.0
      %351 = vmatprep.subr.mxu0 0.0
      %352 = vmatpush1.msra.mxu0 0.0
      %353 = vmatprep.subr.mxu0 0.0
      %354 = vmatpush1.msra.mxu0 0.0
      %355 = vmatprep.subr.mxu0 0.0
      %356 = vmatpush1.msra.mxu0 0.0
      %357 = vmatprep.subr.mxu0 0.0
      %358 = vmatpush1.msra.mxu0 0.0
      %359 = vmatprep.subr.mxu0 0.0
      %360 = vmatpush1.msra.mxu0 0.0
      %361 = vmatprep.subr.mxu0 0.0
      %362 = vmatpush1.msra.mxu0 0.0
      %363 = vmatprep.subr.mxu0 0.0
      %364 = vmatpush1.msra.mxu0 0.0
      %365 = vmatprep.subr.mxu0 0.0
      %366 = vmatpush1.msra.mxu0 0.0
      %367 = vmatprep.subr.mxu0 0.0
      %368 = vmatpush1.msra.mxu0 0.0
      %369 = vmatprep.subr.mxu0 0.0
      %370 = vmatpush1.msra.mxu0 0.0
      %371 = vmatprep.subr.mxu0 0.0
      %372 = vmatpush1.msra.mxu0 0.0
      %373 = vmatprep.subr.mxu0 0.0
      %374 = vmatpush1.msra.mxu0 0.0
      %375 = vmatprep.subr.mxu0 0.0
      %376 = vmatpush1.msra.mxu0 0.0
      %377 = vmatprep.subr.mxu0 0.0
      %378 = vmatpush1.msra.mxu0 0.0
      %379 = vmatprep.subr.mxu0 0.0
      %380 = vmatpush1.msra.mxu0 0.0
      %381 = vmatprep.subr.mxu0 0.0
      %382 = vmatpush1.msra.mxu0 0.0
      %383 = vmatprep.subr.mxu0 0.0
      %384 = vmatpush1.msra.mxu0 0.0
      %385 = vmatprep.subr.mxu0 0.0
      %386 = vmatpush1.msra.mxu0 0.0
      %387 = vmatprep.subr.mxu0 0.0
      %388 = vmatpush1.msra.mxu0 0.0
      %389 = vmatprep.subr.mxu0 0.0
      %390 = vmatpush1.msra.mxu0 0.0
      %391 = vmatprep.subr.mxu0 0.0
      %392 = vmatpush1.msra.mxu0 0.0
      %393 = vmatprep.mubr.f32.mxu0 0.0
      %394 = vmatmul.mubr.f32.gmra.mrb[0].mxu0 %v323
      %v395 = vpop.f32.mrb[0].mxu0
      %v396 = vadd.f32 0.0, %v395
      %v397 = vpop.f32.mrb[0].mxu0
      %v398 = vadd.f32 0.0, %v397
      %399 = vdwg.mxu0
      %vm400 = vcmask 1041408
      %v401 = vsel %vm400, %v396, 0.0
      %v402 = vsel %vm400, %v398, 0.0
      %v403 = vadd.f32 %v401, %v402
      %404 = vadd.xlane.f32.xlu0 %v403
      %v405 = vpop.xlane.xlu0 %404
      %v406 = vrot.slane %v405, 4
      %v407 = vadd.f32 %v405, %v406
      %v408 = vrot.slane %v407, 2
      %v409 = vadd.f32 %v407, %v408
      %v410 = vrot.slane %v409, 1
      %v411 = vadd.f32 %v409, %v410
      %s412 = vtos %v411
      %v413 = vrcp.pop 512.0
      %s414 = vtos %v413
      %s415 = smul.f32 %s412, %s414
      %v416 = vstv %s415
      %v417 = vsub.f32 %v396, %v416
      %v418 = vsub.f32 %v398, %v416
      %v419 = vmul.f32 %v417, %v417
      %v420 = vmul.f32 %v418, %v418
      %v421 = vsel %vm400, %v419, 0.0
      %v422 = vsel %vm400, %v420, 0.0
      %v423 = vadd.f32 %v421, %v422
      %424 = vadd.xlane.f32.xlu0 %v423
      %v425 = vpop.xlane.xlu0 %424
      %v426 = vrot.slane %v425, 4
      %v427 = vadd.f32 %v425, %v426
      %v428 = vrot.slane %v427, 2
      %v429 = vadd.f32 %v427, %v428
      %v430 = vrot.slane %v429, 1
      %v431 = vadd.f32 %v429, %v430
      %s432 = vtos %v431
      %v433 = vrcp.pop 512.0
      %s434 = vtos %v433
      %s435 = smul.f32 %s432, %s434
      %s436 = sadd.f32 %s435, 1e-05
      %v437 = vstv %s436
      %v438 = vrsqrt.pop %v437
      %s439 = vtos %v438
      %v440 = vstv %s439
      %v441 = vmul.f32 %v417, %v440
      %v442 = vmul.f32 %v418, %v440
      %v443 = vmul.f32 %v441, 0.2
      %v444 = vmul.f32 %v442, 0.2
      %v445 = vmax.f32 %v441, %v443
      %v446 = vmax.f32 %v442, %v444
      %447 = vrot.lane.b32.xlu0 %v445, 1
      %v448 = vpop.permute.xlu0 %447
      %449 = vrot.lane.b32.xlu0 %v446, 1
      %v450 = vpop.permute.xlu0 %449
      %v451 = vsel %vm267, %v448, %v450
      %v452 = vsel %vm267, %v450, %v448
      %453 = vrot.lane.b32.xlu0 %v445, 127
      %v454 = vpop.permute.xlu0 %453
      %455 = vrot.lane.b32.xlu0 %v446, 127
      %v456 = vpop.permute.xlu0 %455
      %vm457 = vcmp.lt.s32.totalorder %v261, 127
      %v458 = vsel %vm457, %v454, %v456
      %v459 = vsel %vm457, %v456, %v454
      %v460 = vsel %vm269, 1, 0
      %s461 = vtos %v460
      %v462 = vstv %s461
      %vm463 = vcmp.eq.s32.totalorder %v462, 1
      %v464 = vsel %vm463, %v452, %v458
      %v465 = vsel %vm463, %v451, %v459
      %v466 = vsel %vm463, %v458, %v452
      %v467 = vsel %vm463, %v459, %v451
      %v468 = vsel %vm256, 1, 0
      %v469 = vlaneseq
      %v470 = vshrl.u32 %v469, 7
      %v471 = vsub.s32 0, %v470
      %v472 = vrot.slane %v468, %v471
      %v473 = vlaneseq
      %v474 = vshrl.u32 %v473, 7
      %v475 = vsub.s32 1, %v474
      %v476 = vrot.slane %v468, %v475
      %vm477 = vcmp.eq.s32.totalorder %v472, 1
      %vm478 = vcmp.eq.s32.totalorder %v476, 1
      %v479 = vsel %vm477, %v466, %v464
      %v480 = vsel %vm478, %v467, %v465
      %v481 = vsel %vm257, 1, 0
      %v482 = vlaneseq
      %v483 = vshrl.u32 %v482, 7
      %v484 = vsub.s32 0, %v483
      %v485 = vrot.slane %v481, %v484
      %v486 = vlaneseq
      %v487 = vshrl.u32 %v486, 7
      %v488 = vsub.s32 1, %v487
      %v489 = vrot.slane %v481, %v488
      %vm490 = vcmp.eq.s32.totalorder %v485, 1
      %vm491 = vcmp.eq.s32.totalorder %v489, 1
      %v492 = vsel %vm490, %v464, %v466
      %v493 = vsel %vm491, %v465, %v467
      %494 = vrot.lane.b32.xlu0 %v479, 16
      %v495 = vpop.permute.xlu0 %494
      %496 = vrot.lane.b32.xlu0 %v480, 16
      %v497 = vpop.permute.xlu0 %496
      %vm498 = vcmp.lt.s32.totalorder %v261, 16
      %v499 = vsel %vm498, %v495, %v497
      %v500 = vsel %vm498, %v497, %v495
      %501 = vrot.lane.b32.xlu0 %v479, 112
      %v502 = vpop.permute.xlu0 %501
      %503 = vrot.lane.b32.xlu0 %v480, 112
      %v504 = vpop.permute.xlu0 %503
      %vm505 = vcmp.lt.s32.totalorder %v261, 112
      %v506 = vsel %vm505, %v502, %v504
      %v507 = vsel %vm505, %v504, %v502
      %v508 = vsel %vm463, %v500, %v506
      %v509 = vsel %vm463, %v499, %v507
      %v510 = vsel %vm463, %v506, %v500
      %v511 = vsel %vm463, %v507, %v499
      %v512 = vsel %vm258, 1, 0
      %v513 = vlaneseq
      %v514 = vshrl.u32 %v513, 7
      %v515 = vsub.s32 0, %v514
      %v516 = vrot.slane %v512, %v515
      %v517 = vlaneseq
      %v518 = vshrl.u32 %v517, 7
      %v519 = vsub.s32 1, %v518
      %v520 = vrot.slane %v512, %v519
      %vm521 = vcmp.eq.s32.totalorder %v516, 1
      %vm522 = vcmp.eq.s32.totalorder %v520, 1
      %v523 = vsel %vm521, %v510, %v508
      %v524 = vsel %vm522, %v511, %v509
      %v525 = vsel %vm259, 1, 0
      %v526 = vlaneseq
      %v527 = vshrl.u32 %v526, 7
      %v528 = vsub.s32 0, %v527
      %v529 = vrot.slane %v525, %v528
      %v530 = vlaneseq
      %v531 = vshrl.u32 %v530, 7
      %v532 = vsub.s32 1, %v531
      %v533 = vrot.slane %v525, %v532
      %vm534 = vcmp.eq.s32.totalorder %v529, 1
      %vm535 = vcmp.eq.s32.totalorder %v533, 1
      %v536 = vsel %vm534, %v508, %v510
      %v537 = vsel %vm535, %v509, %v511
      %v538 = vld [vmem:[%s3] sm:$0x3]
      %s539 = scalar_lea.vmem %s3, 6
      %v540 = vld [vmem:[%s539] sm:$0x3]
      %vm541 = vcmask 15360
      %v543 = vsel %vm541, %v540, 0
      %v546 = vsel %vm400, %v479, 0
      %v549 = vsel %vm400, %v480, 0
      %551 = vmatprep.subr.mxu0 %v549
      %552 = vmatpush1.msra.mxu0 %v546
      %553 = vmatprep.subr.mxu0 0.0
      %554 = vmatpush1.msra.mxu0 0.0
      %555 = vmatprep.subr.mxu0 0.0
      %556 = vmatpush1.msra.mxu0 0.0
      %557 = vmatprep.subr.mxu0 0.0
      %558 = vmatpush1.msra.mxu0 0.0
      %559 = vmatprep.subr.mxu0 0.0
      %560 = vmatpush1.msra.mxu0 0.0
      %561 = vmatprep.subr.mxu0 0.0
      %562 = vmatpush1.msra.mxu0 0.0
      %563 = vmatprep.subr.mxu0 0.0
      %564 = vmatpush1.msra.mxu0 0.0
      %565 = vmatprep.subr.mxu0 0.0
      %566 = vmatpush1.msra.mxu0 0.0
      %567 = vmatprep.subr.mxu0 0.0
      %568 = vmatpush1.msra.mxu0 0.0
      %569 = vmatprep.subr.mxu0 0.0
      %570 = vmatpush1.msra.mxu0 0.0
      %571 = vmatprep.subr.mxu0 0.0
      %572 = vmatpush1.msra.mxu0 0.0
      %573 = vmatprep.subr.mxu0 0.0
      %574 = vmatpush1.msra.mxu0 0.0
      %575 = vmatprep.subr.mxu0 0.0
      %576 = vmatpush1.msra.mxu0 0.0
      %577 = vmatprep.subr.mxu0 0.0
      %578 = vmatpush1.msra.mxu0 0.0
      %579 = vmatprep.subr.mxu0 0.0
      %580 = vmatpush1.msra.mxu0 0.0
      %581 = vmatprep.subr.mxu0 0.0
      %582 = vmatpush1.msra.mxu0 0.0
      %583 = vmatprep.subr.mxu0 0.0
      %584 = vmatpush1.msra.mxu0 0.0
      %585 = vmatprep.subr.mxu0 0.0
      %586 = vmatpush1.msra.mxu0 0.0
      %587 = vmatprep.subr.mxu0 0.0
      %588 = vmatpush1.msra.mxu0 0.0
      %589 = vmatprep.subr.mxu0 0.0
      %590 = vmatpush1.msra.mxu0 0.0
      %591 = vmatprep.subr.mxu0 0.0
      %592 = vmatpush1.msra.mxu0 0.0
      %593 = vmatprep.subr.mxu0 0.0
      %594 = vmatpush1.msra.mxu0 0.0
      %595 = vmatprep.subr.mxu0 0.0
      %596 = vmatpush1.msra.mxu0 0.0
      %597 = vmatprep.subr.mxu0 0.0
      %598 = vmatpush1.msra.mxu0 0.0
      %599 = vmatprep.subr.mxu0 0.0
      %600 = vmatpush1.msra.mxu0 0.0
      %601 = vmatprep.subr.mxu0 0.0
      %602 = vmatpush1.msra.mxu0 0.0
      %603 = vmatprep.subr.mxu0 0.0
      %604 = vmatpush1.msra.mxu0 0.0
      %605 = vmatprep.subr.mxu0 0.0
      %606 = vmatpush1.msra.mxu0 0.0
      %607 = vmatprep.subr.mxu0 0.0
      %608 = vmatpush1.msra.mxu0 0.0
      %609 = vmatprep.subr.mxu0 0.0
      %610 = vmatpush1.msra.mxu0 0.0
      %611 = vmatprep.subr.mxu0 0.0
      %612 = vmatpush1.msra.mxu0 0.0
      %613 = vmatprep.subr.mxu0 0.0
      %614 = vmatpush1.msra.mxu0 0.0
      %615 = vmatprep.mubr.f32.mxu0 0.0
      %616 = vmatmul.mubr.f32.gmra.mrb[0].mxu0 %v543
      %v617 = vpop.f32.mrb[0].mxu0
      %v618 = vadd.f32 0.0, %v617
      %v619 = vpop.f32.mrb[0].mxu0
      %v620 = vadd.f32 0.0, %v619
      %621 = vdwg.mxu0
      %v623 = vsel %vm541, %v538, 0
      %v626 = vsel %vm400, %v523, 0
      %v629 = vsel %vm400, %v524, 0
      %631 = vmatprep.subr.mxu0 %v629
      %632 = vmatpush1.msra.mxu0 %v626
      %633 = vmatprep.subr.mxu0 0.0
      %634 = vmatpush1.msra.mxu0 0.0
      %635 = vmatprep.subr.mxu0 0.0
      %636 = vmatpush1.msra.mxu0 0.0
      %637 = vmatprep.subr.mxu0 0.0
      %638 = vmatpush1.msra.mxu0 0.0
      %639 = vmatprep.subr.mxu0 0.0
      %640 = vmatpush1.msra.mxu0 0.0
      %641 = vmatprep.subr.mxu0 0.0
      %642 = vmatpush1.msra.mxu0 0.0
      %643 = vmatprep.subr.mxu0 0.0
      %644 = vmatpush1.msra.mxu0 0.0
      %645 = vmatprep.subr.mxu0 0.0
      %646 = vmatpush1.msra.mxu0 0.0
      %647 = vmatprep.subr.mxu0 0.0
      %648 = vmatpush1.msra.mxu0 0.0
      %649 = vmatprep.subr.mxu0 0.0
      %650 = vmatpush1.msra.mxu0 0.0
      %651 = vmatprep.subr.mxu0 0.0
      %652 = vmatpush1.msra.mxu0 0.0
      %653 = vmatprep.subr.mxu0 0.0
      %654 = vmatpush1.msra.mxu0 0.0
      %655 = vmatprep.subr.mxu0 0.0
      %656 = vmatpush1.msra.mxu0 0.0
      %657 = vmatprep.subr.mxu0 0.0
      %658 = vmatpush1.msra.mxu0 0.0
      %659 = vmatprep.subr.mxu0 0.0
      %660 = vmatpush1.msra.mxu0 0.0
      %661 = vmatprep.subr.mxu0 0.0
      %662 = vmatpush1.msra.mxu0 0.0
      %663 = vmatprep.subr.mxu0 0.0
      %664 = vmatpush1.msra.mxu0 0.0
      %665 = vmatprep.subr.mxu0 0.0
      %666 = vmatpush1.msra.mxu0 0.0
      %667 = vmatprep.subr.mxu0 0.0
      %668 = vmatpush1.msra.mxu0 0.0
      %669 = vmatprep.subr.mxu0 0.0
      %670 = vmatpush1.msra.mxu0 0.0
      %671 = vmatprep.subr.mxu0 0.0
      %672 = vmatpush1.msra.mxu0 0.0
      %673 = vmatprep.subr.mxu0 0.0
      %674 = vmatpush1.msra.mxu0 0.0
      %675 = vmatprep.subr.mxu0 0.0
      %676 = vmatpush1.msra.mxu0 0.0
      %677 = vmatprep.subr.mxu0 0.0
      %678 = vmatpush1.msra.mxu0 0.0
      %679 = vmatprep.subr.mxu0 0.0
      %680 = vmatpush1.msra.mxu0 0.0
      %681 = vmatprep.subr.mxu0 0.0
      %682 = vmatpush1.msra.mxu0 0.0
      %683 = vmatprep.subr.mxu0 0.0
      %684 = vmatpush1.msra.mxu0 0.0
      %685 = vmatprep.subr.mxu0 0.0
      %686 = vmatpush1.msra.mxu0 0.0
      %687 = vmatprep.subr.mxu0 0.0
      %688 = vmatpush1.msra.mxu0 0.0
      %689 = vmatprep.subr.mxu0 0.0
      %690 = vmatpush1.msra.mxu0 0.0
      %691 = vmatprep.subr.mxu0 0.0
      %692 = vmatpush1.msra.mxu0 0.0
      %693 = vmatprep.subr.mxu0 0.0
      %694 = vmatpush1.msra.mxu0 0.0
      %695 = vmatprep.mubr.f32.mxu0 0.0
      %696 = vmatmul.mubr.f32.gmra.mrb[0].mxu0 %v623
      %v697 = vpop.f32.mrb[0].mxu0
      %v698 = vadd.f32 %v618, %v697
      %v699 = vpop.f32.mrb[0].mxu0
      %v700 = vadd.f32 %v620, %v699
      %701 = vdwg.mxu0
      %s702 = scalar_lea.vmem %s3, 12
      %v703 = vld [vmem:[%s702] sm:$0x3]
      %v705 = vsel %vm541, %v703, 0
      %v708 = vsel %vm400, %v536, 0
      %v711 = vsel %vm400, %v537, 0
      %713 = vmatprep.subr.mxu0 %v711
      %714 = vmatpush1.msra.mxu0 %v708
      %715 = vmatprep.subr.mxu0 0.0
      %716 = vmatpush1.msra.mxu0 0.0
      %717 = vmatprep.subr.mxu0 0.0
      %718 = vmatpush1.msra.mxu0 0.0
      %719 = vmatprep.subr.mxu0 0.0
      %720 = vmatpush1.msra.mxu0 0.0
      %721 = vmatprep.subr.mxu0 0.0
      %722 = vmatpush1.msra.mxu0 0.0
      %723 = vmatprep.subr.mxu0 0.0
      %724 = vmatpush1.msra.mxu0 0.0
      %725 = vmatprep.subr.mxu0 0.0
      %726 = vmatpush1.msra.mxu0 0.0
      %727 = vmatprep.subr.mxu0 0.0
      %728 = vmatpush1.msra.mxu0 0.0
      %729 = vmatprep.subr.mxu0 0.0
      %730 = vmatpush1.msra.mxu0 0.0
      %731 = vmatprep.subr.mxu0 0.0
      %732 = vmatpush1.msra.mxu0 0.0
      %733 = vmatprep.subr.mxu0 0.0
      %734 = vmatpush1.msra.mxu0 0.0
      %735 = vmatprep.subr.mxu0 0.0
      %736 = vmatpush1.msra.mxu0 0.0
      %737 = vmatprep.subr.mxu0 0.0
      %738 = vmatpush1.msra.mxu0 0.0
      %739 = vmatprep.subr.mxu0 0.0
      %740 = vmatpush1.msra.mxu0 0.0
      %741 = vmatprep.subr.mxu0 0.0
      %742 = vmatpush1.msra.mxu0 0.0
      %743 = vmatprep.subr.mxu0 0.0
      %744 = vmatpush1.msra.mxu0 0.0
      %745 = vmatprep.subr.mxu0 0.0
      %746 = vmatpush1.msra.mxu0 0.0
      %747 = vmatprep.subr.mxu0 0.0
      %748 = vmatpush1.msra.mxu0 0.0
      %749 = vmatprep.subr.mxu0 0.0
      %750 = vmatpush1.msra.mxu0 0.0
      %751 = vmatprep.subr.mxu0 0.0
      %752 = vmatpush1.msra.mxu0 0.0
      %753 = vmatprep.subr.mxu0 0.0
      %754 = vmatpush1.msra.mxu0 0.0
      %755 = vmatprep.subr.mxu0 0.0
      %756 = vmatpush1.msra.mxu0 0.0
      %757 = vmatprep.subr.mxu0 0.0
      %758 = vmatpush1.msra.mxu0 0.0
      %759 = vmatprep.subr.mxu0 0.0
      %760 = vmatpush1.msra.mxu0 0.0
      %761 = vmatprep.subr.mxu0 0.0
      %762 = vmatpush1.msra.mxu0 0.0
      %763 = vmatprep.subr.mxu0 0.0
      %764 = vmatpush1.msra.mxu0 0.0
      %765 = vmatprep.subr.mxu0 0.0
      %766 = vmatpush1.msra.mxu0 0.0
      %767 = vmatprep.subr.mxu0 0.0
      %768 = vmatpush1.msra.mxu0 0.0
      %769 = vmatprep.subr.mxu0 0.0
      %770 = vmatpush1.msra.mxu0 0.0
      %771 = vmatprep.subr.mxu0 0.0
      %772 = vmatpush1.msra.mxu0 0.0
      %773 = vmatprep.subr.mxu0 0.0
      %774 = vmatpush1.msra.mxu0 0.0
      %775 = vmatprep.subr.mxu0 0.0
      %776 = vmatpush1.msra.mxu0 0.0
      %777 = vmatprep.mubr.f32.mxu0 0.0
      %778 = vmatmul.mubr.f32.gmra.mrb[0].mxu0 %v705
      %v779 = vpop.f32.mrb[0].mxu0
      %v780 = vadd.f32 0.0, %v779
      %v781 = vpop.f32.mrb[0].mxu0
      %v782 = vadd.f32 0.0, %v781
      %783 = vdwg.mxu0
      %v784 = vadd.f32 %v698, %v780
      %v785 = vadd.f32 %v700, %v782
      %786 = vrot.lane.b32.xlu0 %v445, 16
      %v787 = vpop.permute.xlu0 %786
      %788 = vrot.lane.b32.xlu0 %v446, 16
      %v789 = vpop.permute.xlu0 %788
      %v790 = vsel %vm498, %v787, %v789
      %v791 = vsel %vm498, %v789, %v787
      %792 = vrot.lane.b32.xlu0 %v445, 112
      %v793 = vpop.permute.xlu0 %792
      %794 = vrot.lane.b32.xlu0 %v446, 112
      %v795 = vpop.permute.xlu0 %794
      %v796 = vsel %vm505, %v793, %v795
      %v797 = vsel %vm505, %v795, %v793
      %v798 = vsel %vm463, %v791, %v796
      %v799 = vsel %vm463, %v790, %v797
      %v800 = vsel %vm463, %v796, %v791
      %v801 = vsel %vm463, %v797, %v790
      %v802 = vsel %vm521, %v800, %v798
      %v803 = vsel %vm522, %v801, %v799
      %v804 = vsel %vm534, %v798, %v800
      %v805 = vsel %vm535, %v799, %v801
      %s806 = scalar_lea.vmem %s3, 2
      %v807 = vld [vmem:[%s806] sm:$0x3]
      %v809 = vsel %vm541, %v807, 0
      %v812 = vsel %vm400, %v802, 0
      %v815 = vsel %vm400, %v803, 0
      %817 = vmatprep.subr.mxu0 %v815
      %818 = vmatpush1.msra.mxu0 %v812
      %819 = vmatprep.subr.mxu0 0.0
      %820 = vmatpush1.msra.mxu0 0.0
      %821 = vmatprep.subr.mxu0 0.0
      %822 = vmatpush1.msra.mxu0 0.0
      %823 = vmatprep.subr.mxu0 0.0
      %824 = vmatpush1.msra.mxu0 0.0
      %825 = vmatprep.subr.mxu0 0.0
      %826 = vmatpush1.msra.mxu0 0.0
      %827 = vmatprep.subr.mxu0 0.0
      %828 = vmatpush1.msra.mxu0 0.0
      %829 = vmatprep.subr.mxu0 0.0
      %830 = vmatpush1.msra.mxu0 0.0
      %831 = vmatprep.subr.mxu0 0.0
      %832 = vmatpush1.msra.mxu0 0.0
      %833 = vmatprep.subr.mxu0 0.0
      %834 = vmatpush1.msra.mxu0 0.0
      %835 = vmatprep.subr.mxu0 0.0
      %836 = vmatpush1.msra.mxu0 0.0
      %837 = vmatprep.subr.mxu0 0.0
      %838 = vmatpush1.msra.mxu0 0.0
      %839 = vmatprep.subr.mxu0 0.0
      %840 = vmatpush1.msra.mxu0 0.0
      %841 = vmatprep.subr.mxu0 0.0
      %842 = vmatpush1.msra.mxu0 0.0
      %843 = vmatprep.subr.mxu0 0.0
      %844 = vmatpush1.msra.mxu0 0.0
      %845 = vmatprep.subr.mxu0 0.0
      %846 = vmatpush1.msra.mxu0 0.0
      %847 = vmatprep.subr.mxu0 0.0
      %848 = vmatpush1.msra.mxu0 0.0
      %849 = vmatprep.subr.mxu0 0.0
      %850 = vmatpush1.msra.mxu0 0.0
      %851 = vmatprep.subr.mxu0 0.0
      %852 = vmatpush1.msra.mxu0 0.0
      %853 = vmatprep.subr.mxu0 0.0
      %854 = vmatpush1.msra.mxu0 0.0
      %855 = vmatprep.subr.mxu0 0.0
      %856 = vmatpush1.msra.mxu0 0.0
      %857 = vmatprep.subr.mxu0 0.0
      %858 = vmatpush1.msra.mxu0 0.0
      %859 = vmatprep.subr.mxu0 0.0
      %860 = vmatpush1.msra.mxu0 0.0
      %861 = vmatprep.subr.mxu0 0.0
      %862 = vmatpush1.msra.mxu0 0.0
      %863 = vmatprep.subr.mxu0 0.0
      %864 = vmatpush1.msra.mxu0 0.0
      %865 = vmatprep.subr.mxu0 0.0
      %866 = vmatpush1.msra.mxu0 0.0
      %867 = vmatprep.subr.mxu0 0.0
      %868 = vmatpush1.msra.mxu0 0.0
      %869 = vmatprep.subr.mxu0 0.0
      %870 = vmatpush1.msra.mxu0 0.0
      %871 = vmatprep.subr.mxu0 0.0
      %872 = vmatpush1.msra.mxu0 0.0
      %873 = vmatprep.subr.mxu0 0.0
      %874 = vmatpush1.msra.mxu0 0.0
      %875 = vmatprep.subr.mxu0 0.0
      %876 = vmatpush1.msra.mxu0 0.0
      %877 = vmatprep.subr.mxu0 0.0
      %878 = vmatpush1.msra.mxu0 0.0
      %879 = vmatprep.subr.mxu0 0.0
      %880 = vmatpush1.msra.mxu0 0.0
      %881 = vmatprep.mubr.f32.mxu0 0.0
      %882 = vmatmul.mubr.f32.gmra.mrb[0].mxu0 %v809
      %v883 = vpop.f32.mrb[0].mxu0
      %v884 = vadd.f32 0.0, %v883
      %v885 = vpop.f32.mrb[0].mxu0
      %v886 = vadd.f32 0.0, %v885
      %887 = vdwg.mxu0
      %v888 = vadd.f32 %v784, %v884
      %v889 = vadd.f32 %v785, %v886
      %s890 = scalar_lea.vmem %s3, 8
      %v891 = vld [vmem:[%s890] sm:$0x3]
      %v893 = vsel %vm541, %v891, 0
      %v896 = vsel %vm400, %v445, 0
      %v899 = vsel %vm400, %v446, 0
      %901 = vmatprep.subr.mxu0 %v899
      %902 = vmatpush1.msra.mxu0 %v896
      %903 = vmatprep.subr.mxu0 0.0
      %904 = vmatpush1.msra.mxu0 0.0
      %905 = vmatprep.subr.mxu0 0.0
      %906 = vmatpush1.msra.mxu0 0.0
      %907 = vmatprep.subr.mxu0 0.0
      %908 = vmatpush1.msra.mxu0 0.0
      %909 = vmatprep.subr.mxu0 0.0
      %910 = vmatpush1.msra.mxu0 0.0
      %911 = vmatprep.subr.mxu0 0.0
      %912 = vmatpush1.msra.mxu0 0.0
      %913 = vmatprep.subr.mxu0 0.0
      %914 = vmatpush1.msra.mxu0 0.0
      %915 = vmatprep.subr.mxu0 0.0
      %916 = vmatpush1.msra.mxu0 0.0
      %917 = vmatprep.subr.mxu0 0.0
      %918 = vmatpush1.msra.mxu0 0.0
      %919 = vmatprep.subr.mxu0 0.0
      %920 = vmatpush1.msra.mxu0 0.0
      %921 = vmatprep.subr.mxu0 0.0
      %922 = vmatpush1.msra.mxu0 0.0
      %923 = vmatprep.subr.mxu0 0.0
      %924 = vmatpush1.msra.mxu0 0.0
      %925 = vmatprep.subr.mxu0 0.0
      %926 = vmatpush1.msra.mxu0 0.0
      %927 = vmatprep.subr.mxu0 0.0
      %928 = vmatpush1.msra.mxu0 0.0
      %929 = vmatprep.subr.mxu0 0.0
      %930 = vmatpush1.msra.mxu0 0.0
      %931 = vmatprep.subr.mxu0 0.0
      %932 = vmatpush1.msra.mxu0 0.0
      %933 = vmatprep.subr.mxu0 0.0
      %934 = vmatpush1.msra.mxu0 0.0
      %935 = vmatprep.subr.mxu0 0.0
      %936 = vmatpush1.msra.mxu0 0.0
      %937 = vmatprep.subr.mxu0 0.0
      %938 = vmatpush1.msra.mxu0 0.0
      %939 = vmatprep.subr.mxu0 0.0
      %940 = vmatpush1.msra.mxu0 0.0
      %941 = vmatprep.subr.mxu0 0.0
      %942 = vmatpush1.msra.mxu0 0.0
      %943 = vmatprep.subr.mxu0 0.0
      %944 = vmatpush1.msra.mxu0 0.0
      %945 = vmatprep.subr.mxu0 0.0
      %946 = vmatpush1.msra.mxu0 0.0
      %947 = vmatprep.subr.mxu0 0.0
      %948 = vmatpush1.msra.mxu0 0.0
      %949 = vmatprep.subr.mxu0 0.0
      %950 = vmatpush1.msra.mxu0 0.0
      %951 = vmatprep.subr.mxu0 0.0
      %952 = vmatpush1.msra.mxu0 0.0
      %953 = vmatprep.subr.mxu0 0.0
      %954 = vmatpush1.msra.mxu0 0.0
      %955 = vmatprep.subr.mxu0 0.0
      %956 = vmatpush1.msra.mxu0 0.0
      %957 = vmatprep.subr.mxu0 0.0
      %958 = vmatpush1.msra.mxu0 0.0
      %959 = vmatprep.subr.mxu0 0.0
      %960 = vmatpush1.msra.mxu0 0.0
      %961 = vmatprep.subr.mxu0 0.0
      %962 = vmatpush1.msra.mxu0 0.0
      %963 = vmatprep.subr.mxu0 0.0
      %964 = vmatpush1.msra.mxu0 0.0
      %965 = vmatprep.mubr.f32.mxu0 0.0
      %966 = vmatmul.mubr.f32.gmra.mrb[0].mxu0 %v893
      %v967 = vpop.f32.mrb[0].mxu0
      %v968 = vadd.f32 0.0, %v967
      %v969 = vpop.f32.mrb[0].mxu0
      %v970 = vadd.f32 0.0, %v969
      %971 = vdwg.mxu0
      %v972 = vadd.f32 %v888, %v968
      %v973 = vadd.f32 %v889, %v970
      %s974 = scalar_lea.vmem %s3, 14
      %v975 = vld [vmem:[%s974] sm:$0x3]
      %v977 = vsel %vm541, %v975, 0
      %v980 = vsel %vm400, %v804, 0
      %v983 = vsel %vm400, %v805, 0
      %985 = vmatprep.subr.mxu0 %v983
      %986 = vmatpush1.msra.mxu0 %v980
      %987 = vmatprep.subr.mxu0 0.0
      %988 = vmatpush1.msra.mxu0 0.0
      %989 = vmatprep.subr.mxu0 0.0
      %990 = vmatpush1.msra.mxu0 0.0
      %991 = vmatprep.subr.mxu0 0.0
      %992 = vmatpush1.msra.mxu0 0.0
      %993 = vmatprep.subr.mxu0 0.0
      %994 = vmatpush1.msra.mxu0 0.0
      %995 = vmatprep.subr.mxu0 0.0
      %996 = vmatpush1.msra.mxu0 0.0
      %997 = vmatprep.subr.mxu0 0.0
      %998 = vmatpush1.msra.mxu0 0.0
      %999 = vmatprep.subr.mxu0 0.0
      %1000 = vmatpush1.msra.mxu0 0.0
      %1001 = vmatprep.subr.mxu0 0.0
      %1002 = vmatpush1.msra.mxu0 0.0
      %1003 = vmatprep.subr.mxu0 0.0
      %1004 = vmatpush1.msra.mxu0 0.0
      %1005 = vmatprep.subr.mxu0 0.0
      %1006 = vmatpush1.msra.mxu0 0.0
      %1007 = vmatprep.subr.mxu0 0.0
      %1008 = vmatpush1.msra.mxu0 0.0
      %1009 = vmatprep.subr.mxu0 0.0
      %1010 = vmatpush1.msra.mxu0 0.0
      %1011 = vmatprep.subr.mxu0 0.0
      %1012 = vmatpush1.msra.mxu0 0.0
      %1013 = vmatprep.subr.mxu0 0.0
      %1014 = vmatpush1.msra.mxu0 0.0
      %1015 = vmatprep.subr.mxu0 0.0
      %1016 = vmatpush1.msra.mxu0 0.0
      %1017 = vmatprep.subr.mxu0 0.0
      %1018 = vmatpush1.msra.mxu0 0.0
      %1019 = vmatprep.subr.mxu0 0.0
      %1020 = vmatpush1.msra.mxu0 0.0
      %1021 = vmatprep.subr.mxu0 0.0
      %1022 = vmatpush1.msra.mxu0 0.0
      %1023 = vmatprep.subr.mxu0 0.0
      %1024 = vmatpush1.msra.mxu0 0.0
      %1025 = vmatprep.subr.mxu0 0.0
      %1026 = vmatpush1.msra.mxu0 0.0
      %1027 = vmatprep.subr.mxu0 0.0
      %1028 = vmatpush1.msra.mxu0 0.0
      %1029 = vmatprep.subr.mxu0 0.0
      %1030 = vmatpush1.msra.mxu0 0.0
      %1031 = vmatprep.subr.mxu0 0.0
      %1032 = vmatpush1.msra.mxu0 0.0
      %1033 = vmatprep.subr.mxu0 0.0
      %1034 = vmatpush1.msra.mxu0 0.0
      %1035 = vmatprep.subr.mxu0 0.0
      %1036 = vmatpush1.msra.mxu0 0.0
      %1037 = vmatprep.subr.mxu0 0.0
      %1038 = vmatpush1.msra.mxu0 0.0
      %1039 = vmatprep.subr.mxu0 0.0
      %1040 = vmatpush1.msra.mxu0 0.0
      %1041 = vmatprep.subr.mxu0 0.0
      %1042 = vmatpush1.msra.mxu0 0.0
      %1043 = vmatprep.subr.mxu0 0.0
      %1044 = vmatpush1.msra.mxu0 0.0
      %1045 = vmatprep.subr.mxu0 0.0
      %1046 = vmatpush1.msra.mxu0 0.0
      %1047 = vmatprep.subr.mxu0 0.0
      %1048 = vmatpush1.msra.mxu0 0.0
      %1049 = vmatprep.mubr.f32.mxu0 0.0
      %1050 = vmatmul.mubr.f32.gmra.mrb[0].mxu0 %v977
      %v1051 = vpop.f32.mrb[0].mxu0
      %v1052 = vadd.f32 0.0, %v1051
      %v1053 = vpop.f32.mrb[0].mxu0
      %v1054 = vadd.f32 0.0, %v1053
      %1055 = vdwg.mxu0
      %v1056 = vadd.f32 %v972, %v1052
      %v1057 = vadd.f32 %v973, %v1054
      %1058 = vrot.lane.b32.xlu0 %v492, 16
      %v1059 = vpop.permute.xlu0 %1058
      %1060 = vrot.lane.b32.xlu0 %v493, 16
      %v1061 = vpop.permute.xlu0 %1060
      %v1062 = vsel %vm498, %v1059, %v1061
      %v1063 = vsel %vm498, %v1061, %v1059
      %1064 = vrot.lane.b32.xlu0 %v492, 112
      %v1065 = vpop.permute.xlu0 %1064
      %1066 = vrot.lane.b32.xlu0 %v493, 112
      %v1067 = vpop.permute.xlu0 %1066
      %v1068 = vsel %vm505, %v1065, %v1067
      %v1069 = vsel %vm505, %v1067, %v1065
      %v1070 = vsel %vm463, %v1063, %v1068
      %v1071 = vsel %vm463, %v1062, %v1069
      %v1072 = vsel %vm463, %v1068, %v1063
      %v1073 = vsel %vm463, %v1069, %v1062
      %v1074 = vsel %vm521, %v1072, %v1070
      %v1075 = vsel %vm522, %v1073, %v1071
      %v1076 = vsel %vm534, %v1070, %v1072
      %v1077 = vsel %vm535, %v1071, %v1073
      %s1078 = scalar_lea.vmem %s3, 4
      %v1079 = vld [vmem:[%s1078] sm:$0x3]
      %v1081 = vsel %vm541, %v1079, 0
      %v1084 = vsel %vm400, %v1074, 0
      %v1087 = vsel %vm400, %v1075, 0
      %1089 = vmatprep.subr.mxu0 %v1087
      %1090 = vmatpush1.msra.mxu0 %v1084
      %1091 = vmatprep.subr.mxu0 0.0
      %1092 = vmatpush1.msra.mxu0 0.0
      %1093 = vmatprep.subr.mxu0 0.0
      %1094 = vmatpush1.msra.mxu0 0.0
      %1095 = vmatprep.subr.mxu0 0.0
      %1096 = vmatpush1.msra.mxu0 0.0
      %1097 = vmatprep.subr.mxu0 0.0
      %1098 = vmatpush1.msra.mxu0 0.0
      %1099 = vmatprep.subr.mxu0 0.0
      %1100 = vmatpush1.msra.mxu0 0.0
      %1101 = vmatprep.subr.mxu0 0.0
      %1102 = vmatpush1.msra.mxu0 0.0
      %1103 = vmatprep.subr.mxu0 0.0
      %1104 = vmatpush1.msra.mxu0 0.0
      %1105 = vmatprep.subr.mxu0 0.0
      %1106 = vmatpush1.msra.mxu0 0.0
      %1107 = vmatprep.subr.mxu0 0.0
      %1108 = vmatpush1.msra.mxu0 0.0
      %1109 = vmatprep.subr.mxu0 0.0
      %1110 = vmatpush1.msra.mxu0 0.0
      %1111 = vmatprep.subr.mxu0 0.0
      %1112 = vmatpush1.msra.mxu0 0.0
      %1113 = vmatprep.subr.mxu0 0.0
      %1114 = vmatpush1.msra.mxu0 0.0
      %1115 = vmatprep.subr.mxu0 0.0
      %1116 = vmatpush1.msra.mxu0 0.0
      %1117 = vmatprep.subr.mxu0 0.0
      %1118 = vmatpush1.msra.mxu0 0.0
      %1119 = vmatprep.subr.mxu0 0.0
      %1120 = vmatpush1.msra.mxu0 0.0
      %1121 = vmatprep.subr.mxu0 0.0
      %1122 = vmatpush1.msra.mxu0 0.0
      %1123 = vmatprep.subr.mxu0 0.0
      %1124 = vmatpush1.msra.mxu0 0.0
      %1125 = vmatprep.subr.mxu0 0.0
      %1126 = vmatpush1.msra.mxu0 0.0
      %1127 = vmatprep.subr.mxu0 0.0
      %1128 = vmatpush1.msra.mxu0 0.0
      %1129 = vmatprep.subr.mxu0 0.0
      %1130 = vmatpush1.msra.mxu0 0.0
      %1131 = vmatprep.subr.mxu0 0.0
      %1132 = vmatpush1.msra.mxu0 0.0
      %1133 = vmatprep.subr.mxu0 0.0
      %1134 = vmatpush1.msra.mxu0 0.0
      %1135 = vmatprep.subr.mxu0 0.0
      %1136 = vmatpush1.msra.mxu0 0.0
      %1137 = vmatprep.subr.mxu0 0.0
      %1138 = vmatpush1.msra.mxu0 0.0
      %1139 = vmatprep.subr.mxu0 0.0
      %1140 = vmatpush1.msra.mxu0 0.0
      %1141 = vmatprep.subr.mxu0 0.0
      %1142 = vmatpush1.msra.mxu0 0.0
      %1143 = vmatprep.subr.mxu0 0.0
      %1144 = vmatpush1.msra.mxu0 0.0
      %1145 = vmatprep.subr.mxu0 0.0
      %1146 = vmatpush1.msra.mxu0 0.0
      %1147 = vmatprep.subr.mxu0 0.0
      %1148 = vmatpush1.msra.mxu0 0.0
      %1149 = vmatprep.subr.mxu0 0.0
      %1150 = vmatpush1.msra.mxu0 0.0
      %1151 = vmatprep.subr.mxu0 0.0
      %1152 = vmatpush1.msra.mxu0 0.0
      %1153 = vmatprep.mubr.f32.mxu0 0.0
      %1154 = vmatmul.mubr.f32.gmra.mrb[0].mxu0 %v1081
      %v1155 = vpop.f32.mrb[0].mxu0
      %v1156 = vadd.f32 0.0, %v1155
      %v1157 = vpop.f32.mrb[0].mxu0
      %v1158 = vadd.f32 0.0, %v1157
      %1159 = vdwg.mxu0
      %v1160 = vadd.f32 %v1056, %v1156
      %v1161 = vadd.f32 %v1057, %v1158
      %s1162 = scalar_lea.vmem %s3, 10
      %v1163 = vld [vmem:[%s1162] sm:$0x3]
      %v1165 = vsel %vm541, %v1163, 0
      %v1168 = vsel %vm400, %v492, 0
      %v1171 = vsel %vm400, %v493, 0
      %1173 = vmatprep.subr.mxu0 %v1171
      %1174 = vmatpush1.msra.mxu0 %v1168
      %1175 = vmatprep.subr.mxu0 0.0
      %1176 = vmatpush1.msra.mxu0 0.0
      %1177 = vmatprep.subr.mxu0 0.0
      %1178 = vmatpush1.msra.mxu0 0.0
      %1179 = vmatprep.subr.mxu0 0.0
      %1180 = vmatpush1.msra.mxu0 0.0
      %1181 = vmatprep.subr.mxu0 0.0
      %1182 = vmatpush1.msra.mxu0 0.0
      %1183 = vmatprep.subr.mxu0 0.0
      %1184 = vmatpush1.msra.mxu0 0.0
      %1185 = vmatprep.subr.mxu0 0.0
      %1186 = vmatpush1.msra.mxu0 0.0
      %1187 = vmatprep.subr.mxu0 0.0
      %1188 = vmatpush1.msra.mxu0 0.0
      %1189 = vmatprep.subr.mxu0 0.0
      %1190 = vmatpush1.msra.mxu0 0.0
      %1191 = vmatprep.subr.mxu0 0.0
      %1192 = vmatpush1.msra.mxu0 0.0
      %1193 = vmatprep.subr.mxu0 0.0
      %1194 = vmatpush1.msra.mxu0 0.0
      %1195 = vmatprep.subr.mxu0 0.0
      %1196 = vmatpush1.msra.mxu0 0.0
      %1197 = vmatprep.subr.mxu0 0.0
      %1198 = vmatpush1.msra.mxu0 0.0
      %1199 = vmatprep.subr.mxu0 0.0
      %1200 = vmatpush1.msra.mxu0 0.0
      %1201 = vmatprep.subr.mxu0 0.0
      %1202 = vmatpush1.msra.mxu0 0.0
      %1203 = vmatprep.subr.mxu0 0.0
      %1204 = vmatpush1.msra.mxu0 0.0
      %1205 = vmatprep.subr.mxu0 0.0
      %1206 = vmatpush1.msra.mxu0 0.0
      %1207 = vmatprep.subr.mxu0 0.0
      %1208 = vmatpush1.msra.mxu0 0.0
      %1209 = vmatprep.subr.mxu0 0.0
      %1210 = vmatpush1.msra.mxu0 0.0
      %1211 = vmatprep.subr.mxu0 0.0
      %1212 = vmatpush1.msra.mxu0 0.0
      %1213 = vmatprep.subr.mxu0 0.0
      %1214 = vmatpush1.msra.mxu0 0.0
      %1215 = vmatprep.subr.mxu0 0.0
      %1216 = vmatpush1.msra.mxu0 0.0
      %1217 = vmatprep.subr.mxu0 0.0
      %1218 = vmatpush1.msra.mxu0 0.0
      %1219 = vmatprep.subr.mxu0 0.0
      %1220 = vmatpush1.msra.mxu0 0.0
      %1221 = vmatprep.subr.mxu0 0.0
      %1222 = vmatpush1.msra.mxu0 0.0
      %1223 = vmatprep.subr.mxu0 0.0
      %1224 = vmatpush1.msra.mxu0 0.0
      %1225 = vmatprep.subr.mxu0 0.0
      %1226 = vmatpush1.msra.mxu0 0.0
      %1227 = vmatprep.subr.mxu0 0.0
      %1228 = vmatpush1.msra.mxu0 0.0
      %1229 = vmatprep.subr.mxu0 0.0
      %1230 = vmatpush1.msra.mxu0 0.0
      %1231 = vmatprep.subr.mxu0 0.0
      %1232 = vmatpush1.msra.mxu0 0.0
      %1233 = vmatprep.subr.mxu0 0.0
      %1234 = vmatpush1.msra.mxu0 0.0
      %1235 = vmatprep.subr.mxu0 0.0
      %1236 = vmatpush1.msra.mxu0 0.0
      %1237 = vmatprep.mubr.f32.mxu0 0.0
      %1238 = vmatmul.mubr.f32.gmra.mrb[0].mxu0 %v1165
      %v1239 = vpop.f32.mrb[0].mxu0
      %v1240 = vadd.f32 0.0, %v1239
      %v1241 = vpop.f32.mrb[0].mxu0
      %v1242 = vadd.f32 0.0, %v1241
      %1243 = vdwg.mxu0
      %v1244 = vadd.f32 %v1160, %v1240
      %v1245 = vadd.f32 %v1161, %v1242
      %s1246 = scalar_lea.vmem %s3, 16
      %v1247 = vld [vmem:[%s1246] sm:$0x3]
      %v1249 = vsel %vm541, %v1247, 0
      %v1252 = vsel %vm400, %v1076, 0
      %v1255 = vsel %vm400, %v1077, 0
      %1257 = vmatprep.subr.mxu0 %v1255
      %1258 = vmatpush1.msra.mxu0 %v1252
      %1259 = vmatprep.subr.mxu0 0.0
      %1260 = vmatpush1.msra.mxu0 0.0
      %1261 = vmatprep.subr.mxu0 0.0
      %1262 = vmatpush1.msra.mxu0 0.0
      %1263 = vmatprep.subr.mxu0 0.0
      %1264 = vmatpush1.msra.mxu0 0.0
      %1265 = vmatprep.subr.mxu0 0.0
      %1266 = vmatpush1.msra.mxu0 0.0
      %1267 = vmatprep.subr.mxu0 0.0
      %1268 = vmatpush1.msra.mxu0 0.0
      %1269 = vmatprep.subr.mxu0 0.0
      %1270 = vmatpush1.msra.mxu0 0.0
      %1271 = vmatprep.subr.mxu0 0.0
      %1272 = vmatpush1.msra.mxu0 0.0
      %1273 = vmatprep.subr.mxu0 0.0
      %1274 = vmatpush1.msra.mxu0 0.0
      %1275 = vmatprep.subr.mxu0 0.0
      %1276 = vmatpush1.msra.mxu0 0.0
      %1277 = vmatprep.subr.mxu0 0.0
      %1278 = vmatpush1.msra.mxu0 0.0
      %1279 = vmatprep.subr.mxu0 0.0
      %1280 = vmatpush1.msra.mxu0 0.0
      %1281 = vmatprep.subr.mxu0 0.0
      %1282 = vmatpush1.msra.mxu0 0.0
      %1283 = vmatprep.subr.mxu0 0.0
      %1284 = vmatpush1.msra.mxu0 0.0
      %1285 = vmatprep.subr.mxu0 0.0
      %1286 = vmatpush1.msra.mxu0 0.0
      %1287 = vmatprep.subr.mxu0 0.0
      %1288 = vmatpush1.msra.mxu0 0.0
      %1289 = vmatprep.subr.mxu0 0.0
      %1290 = vmatpush1.msra.mxu0 0.0
      %1291 = vmatprep.subr.mxu0 0.0
      %1292 = vmatpush1.msra.mxu0 0.0
      %1293 = vmatprep.subr.mxu0 0.0
      %1294 = vmatpush1.msra.mxu0 0.0
      %1295 = vmatprep.subr.mxu0 0.0
      %1296 = vmatpush1.msra.mxu0 0.0
      %1297 = vmatprep.subr.mxu0 0.0
      %1298 = vmatpush1.msra.mxu0 0.0
      %1299 = vmatprep.subr.mxu0 0.0
      %1300 = vmatpush1.msra.mxu0 0.0
      %1301 = vmatprep.subr.mxu0 0.0
      %1302 = vmatpush1.msra.mxu0 0.0
      %1303 = vmatprep.subr.mxu0 0.0
      %1304 = vmatpush1.msra.mxu0 0.0
      %1305 = vmatprep.subr.mxu0 0.0
      %1306 = vmatpush1.msra.mxu0 0.0
      %1307 = vmatprep.subr.mxu0 0.0
      %1308 = vmatpush1.msra.mxu0 0.0
      %1309 = vmatprep.subr.mxu0 0.0
      %1310 = vmatpush1.msra.mxu0 0.0
      %1311 = vmatprep.subr.mxu0 0.0
      %1312 = vmatpush1.msra.mxu0 0.0
      %1313 = vmatprep.subr.mxu0 0.0
      %1314 = vmatpush1.msra.mxu0 0.0
      %1315 = vmatprep.subr.mxu0 0.0
      %1316 = vmatpush1.msra.mxu0 0.0
      %1317 = vmatprep.subr.mxu0 0.0
      %1318 = vmatpush1.msra.mxu0 0.0
      %1319 = vmatprep.subr.mxu0 0.0
      %1320 = vmatpush1.msra.mxu0 0.0
      %1321 = vmatprep.mubr.f32.mxu0 0.0
      %1322 = vmatmul.mubr.f32.gmra.mrb[0].mxu0 %v1249
      %v1323 = vpop.f32.mrb[0].mxu0
      %v1324 = vadd.f32 0.0, %v1323
      %v1325 = vpop.f32.mrb[0].mxu0
      %v1326 = vadd.f32 0.0, %v1325
      %1327 = vdwg.mxu0
      %v1328 = vadd.f32 %v1244, %v1324
      %v1329 = vadd.f32 %v1245, %v1326
      %v1330 = vsel %vm400, %v1328, 0.0
      %v1331 = vsel %vm400, %v1329, 0.0
      %v1332 = vadd.f32 %v1330, %v1331
      %1333 = vadd.xlane.f32.xlu0 %v1332
      %v1334 = vpop.xlane.xlu0 %1333
      %v1335 = vrot.slane %v1334, 4
      %v1336 = vadd.f32 %v1334, %v1335
      %v1337 = vrot.slane %v1336, 2
      %v1338 = vadd.f32 %v1336, %v1337
      %v1339 = vrot.slane %v1338, 1
      %v1340 = vadd.f32 %v1338, %v1339
      %s1341 = vtos %v1340
      %v1342 = vrcp.pop 512.0
      %s1343 = vtos %v1342
      %s1344 = smul.f32 %s1341, %s1343
      %v1345 = vstv %s1344
      %v1346 = vsub.f32 %v1328, %v1345
      %v1347 = vsub.f32 %v1329, %v1345
      %v1348 = vmul.f32 %v1346, %v1346
      %v1349 = vmul.f32 %v1347, %v1347
      %v1350 = vsel %vm400, %v1348, 0.0
      %v1351 = vsel %vm400, %v1349, 0.0
      %v1352 = vadd.f32 %v1350, %v1351
      %1353 = vadd.xlane.f32.xlu0 %v1352
      %v1354 = vpop.xlane.xlu0 %1353
      %v1355 = vrot.slane %v1354, 4
      %v1356 = vadd.f32 %v1354, %v1355
      %v1357 = vrot.slane %v1356, 2
      %v1358 = vadd.f32 %v1356, %v1357
      %v1359 = vrot.slane %v1358, 1
      %v1360 = vadd.f32 %v1358, %v1359
      %s1361 = vtos %v1360
      %v1362 = vrcp.pop 512.0
      %s1363 = vtos %v1362
      %s1364 = smul.f32 %s1361, %s1363
      %s1365 = sadd.f32 %s1364, 1e-05
      %v1366 = vstv %s1365
      %v1367 = vrsqrt.pop %v1366
      %s1368 = vtos %v1367
      %v1369 = vstv %s1368
      %v1370 = vmul.f32 %v1346, %v1369
      %v1371 = vmul.f32 %v1347, %v1369
      %v1372 = vmul.f32 %v1370, 0.2
      %v1373 = vmul.f32 %v1371, 0.2
      %v1374 = vmax.f32 %v1370, %v1372
      %v1375 = vmax.f32 %v1371, %v1373
      %v1376 = vld [vmem:[%s4] sm:$0xff]
      %v1377 = vld [vmem:[%s5] sm:$0xff]
      %v1379 = vsel %vm321, %v1377, 0
      %1381 = vmatprep.subr.mxu0 %v327
      %1382 = vmatpush1.msra.mxu0 %v325
      %1383 = vmatprep.subr.mxu0 0.0
      %1384 = vmatpush1.msra.mxu0 0.0
      %1385 = vmatprep.subr.mxu0 0.0
      %1386 = vmatpush1.msra.mxu0 0.0
      %1387 = vmatprep.subr.mxu0 0.0
      %1388 = vmatpush1.msra.mxu0 0.0
      %1389 = vmatprep.subr.mxu0 0.0
      %1390 = vmatpush1.msra.mxu0 0.0
      %1391 = vmatprep.subr.mxu0 0.0
      %1392 = vmatpush1.msra.mxu0 0.0
      %1393 = vmatprep.subr.mxu0 0.0
      %1394 = vmatpush1.msra.mxu0 0.0
      %1395 = vmatprep.subr.mxu0 0.0
      %1396 = vmatpush1.msra.mxu0 0.0
      %1397 = vmatprep.subr.mxu0 0.0
      %1398 = vmatpush1.msra.mxu0 0.0
      %1399 = vmatprep.subr.mxu0 0.0
      %1400 = vmatpush1.msra.mxu0 0.0
      %1401 = vmatprep.subr.mxu0 0.0
      %1402 = vmatpush1.msra.mxu0 0.0
      %1403 = vmatprep.subr.mxu0 0.0
      %1404 = vmatpush1.msra.mxu0 0.0
      %1405 = vmatprep.subr.mxu0 0.0
      %1406 = vmatpush1.msra.mxu0 0.0
      %1407 = vmatprep.subr.mxu0 0.0
      %1408 = vmatpush1.msra.mxu0 0.0
      %1409 = vmatprep.subr.mxu0 0.0
      %1410 = vmatpush1.msra.mxu0 0.0
      %1411 = vmatprep.subr.mxu0 0.0
      %1412 = vmatpush1.msra.mxu0 0.0
      %1413 = vmatprep.subr.mxu0 0.0
      %1414 = vmatpush1.msra.mxu0 0.0
      %1415 = vmatprep.subr.mxu0 0.0
      %1416 = vmatpush1.msra.mxu0 0.0
      %1417 = vmatprep.subr.mxu0 0.0
      %1418 = vmatpush1.msra.mxu0 0.0
      %1419 = vmatprep.subr.mxu0 0.0
      %1420 = vmatpush1.msra.mxu0 0.0
      %1421 = vmatprep.subr.mxu0 0.0
      %1422 = vmatpush1.msra.mxu0 0.0
      %1423 = vmatprep.subr.mxu0 0.0
      %1424 = vmatpush1.msra.mxu0 0.0
      %1425 = vmatprep.subr.mxu0 0.0
      %1426 = vmatpush1.msra.mxu0 0.0
      %1427 = vmatprep.subr.mxu0 0.0
      %1428 = vmatpush1.msra.mxu0 0.0
      %1429 = vmatprep.subr.mxu0 0.0
      %1430 = vmatpush1.msra.mxu0 0.0
      %1431 = vmatprep.subr.mxu0 0.0
      %1432 = vmatpush1.msra.mxu0 0.0
      %1433 = vmatprep.subr.mxu0 0.0
      %1434 = vmatpush1.msra.mxu0 0.0
      %1435 = vmatprep.subr.mxu0 0.0
      %1436 = vmatpush1.msra.mxu0 0.0
      %1437 = vmatprep.subr.mxu0 0.0
      %1438 = vmatpush1.msra.mxu0 0.0
      %1439 = vmatprep.subr.mxu0 0.0
      %1440 = vmatpush1.msra.mxu0 0.0
      %1441 = vmatprep.subr.mxu0 0.0
      %1442 = vmatpush1.msra.mxu0 0.0
      %1443 = vmatprep.subr.mxu0 0.0
      %1444 = vmatpush1.msra.mxu0 0.0
      %1445 = vmatprep.mubr.f32.mxu0 0.0
      %1446 = vmatmul.mubr.f32.gmra.mrb[0].mxu0 %v1379
      %v1447 = vpop.f32.mrb[0].mxu0
      %v1448 = vadd.f32 0.0, %v1447
      %v1449 = vpop.f32.mrb[0].mxu0
      %v1450 = vadd.f32 0.0, %v1449
      %1451 = vdwg.mxu0
      %v1453 = vsel %vm541, %v1376, 0
      %v1456 = vsel %vm400, %v1374, 0
      %v1459 = vsel %vm400, %v1375, 0
      %1461 = vmatprep.subr.mxu0 %v1459
      %1462 = vmatpush1.msra.mxu0 %v1456
      %1463 = vmatprep.subr.mxu0 0.0
      %1464 = vmatpush1.msra.mxu0 0.0
      %1465 = vmatprep.subr.mxu0 0.0
      %1466 = vmatpush1.msra.mxu0 0.0
      %1467 = vmatprep.subr.mxu0 0.0
      %1468 = vmatpush1.msra.mxu0 0.0
      %1469 = vmatprep.subr.mxu0 0.0
      %1470 = vmatpush1.msra.mxu0 0.0
      %1471 = vmatprep.subr.mxu0 0.0
      %1472 = vmatpush1.msra.mxu0 0.0
      %1473 = vmatprep.subr.mxu0 0.0
      %1474 = vmatpush1.msra.mxu0 0.0
      %1475 = vmatprep.subr.mxu0 0.0
      %1476 = vmatpush1.msra.mxu0 0.0
      %1477 = vmatprep.subr.mxu0 0.0
      %1478 = vmatpush1.msra.mxu0 0.0
      %1479 = vmatprep.subr.mxu0 0.0
      %1480 = vmatpush1.msra.mxu0 0.0
      %1481 = vmatprep.subr.mxu0 0.0
      %1482 = vmatpush1.msra.mxu0 0.0
      %1483 = vmatprep.subr.mxu0 0.0
      %1484 = vmatpush1.msra.mxu0 0.0
      %1485 = vmatprep.subr.mxu0 0.0
      %1486 = vmatpush1.msra.mxu0 0.0
      %1487 = vmatprep.subr.mxu0 0.0
      %1488 = vmatpush1.msra.mxu0 0.0
      %1489 = vmatprep.subr.mxu0 0.0
      %1490 = vmatpush1.msra.mxu0 0.0
      %1491 = vmatprep.subr.mxu0 0.0
      %1492 = vmatpush1.msra.mxu0 0.0
      %1493 = vmatprep.subr.mxu0 0.0
      %1494 = vmatpush1.msra.mxu0 0.0
      %1495 = vmatprep.subr.mxu0 0.0
      %1496 = vmatpush1.msra.mxu0 0.0
      %1497 = vmatprep.subr.mxu0 0.0
      %1498 = vmatpush1.msra.mxu0 0.0
      %1499 = vmatprep.subr.mxu0 0.0
      %1500 = vmatpush1.msra.mxu0 0.0
      %1501 = vmatprep.subr.mxu0 0.0
      %1502 = vmatpush1.msra.mxu0 0.0
      %1503 = vmatprep.subr.mxu0 0.0
      %1504 = vmatpush1.msra.mxu0 0.0
      %1505 = vmatprep.subr.mxu0 0.0
      %1506 = vmatpush1.msra.mxu0 0.0
      %1507 = vmatprep.subr.mxu0 0.0
      %1508 = vmatpush1.msra.mxu0 0.0
      %1509 = vmatprep.subr.mxu0 0.0
      %1510 = vmatpush1.msra.mxu0 0.0
      %1511 = vmatprep.subr.mxu0 0.0
      %1512 = vmatpush1.msra.mxu0 0.0
      %1513 = vmatprep.subr.mxu0 0.0
      %1514 = vmatpush1.msra.mxu0 0.0
      %1515 = vmatprep.subr.mxu0 0.0
      %1516 = vmatpush1.msra.mxu0 0.0
      %1517 = vmatprep.subr.mxu0 0.0
      %1518 = vmatpush1.msra.mxu0 0.0
      %1519 = vmatprep.subr.mxu0 0.0
      %1520 = vmatpush1.msra.mxu0 0.0
      %1521 = vmatprep.subr.mxu0 0.0
      %1522 = vmatpush1.msra.mxu0 0.0
      %1523 = vmatprep.subr.mxu0 0.0
      %1524 = vmatpush1.msra.mxu0 0.0
      %1525 = vmatprep.mubr.f32.mxu0 0.0
      %1526 = vmatmul.mubr.f32.gmra.mrb[0].mxu0 %v1453
      %v1527 = vpop.f32.mrb[0].mxu0
      %v1528 = vadd.f32 %v1448, %v1527
      %v1529 = vpop.f32.mrb[0].mxu0
      %v1530 = vadd.f32 %v1450, %v1529
      %1531 = vdwg.mxu0
      %1532 = vst [vmem:[%s251] sm:$0xff] %v1528
      %1533 = vst [vmem:[%s251 + $0x8] sm:$0xff] %v1530
      %p1534 = scmp.lt.s32.totalorder %s17, 1
      %s1535 = scalar_select %p1534, %s17, 1
      %s1536 = smul.addr %s1535, 2
      %s1537 = smul.addr %s1536, 8
      %s1538 = scalar_lea.vmem %s6, %s1537
      // Predicated region
      $region45: #{residual_block.1} parent=43 // pred_check
        %p1539 = pneg %p166
      $region46: #{residual_block.1} parent=43 // pred_check_branch
        %1541 = sbr.rel (%p1539) target = $region48
      $region47: #{residual_block.1} parent=43 // pred_region
        _
      $region48: #{residual_block.1} parent=43 // pred_fallthru
        _
    $region44: #{residual_block.1} parent=5 // pred_fallthru
      _
    %p1542 = scmp.le.s32.totalorder 2, %s12
    // Predicated region
    $region49: #{residual_block.1} parent=5 // pred_check
      %p1543 = pneg %p1542
    $region50: #{residual_block.1} parent=5 // pred_check_branch
      %1545 = sbr.rel (%p1543) target = $region52
    $region51: #{residual_block.1} parent=5 // pred_region
      %s1546 = ssub.s32 %s12, 2
      // Predicated region
      $region53: #{residual_block.1} parent=51 // pred_check
        %p1547 = pneg %p172
      $region54: #{residual_block.1} parent=51 // pred_check_branch
        %1549 = sbr.rel (%p1547) target = $region56
      $region55: #{residual_block.1} parent=51 // pred_region
        %p1550 = scmp.lt.s32.totalorder %s18, 1
        %s1551 = scalar_select %p1550, %s18, 1
        %s1552 = smul.addr %s1551, 2
        %s1553 = smul.addr %s1552, 8
        %s1554 = scalar_lea.vmem %s6, %s1553
      $region56: #{residual_block.1} parent=51 // pred_fallthru
        _
    $region52: #{residual_block.1} parent=5 // pred_fallthru
      _
  $region6: #{residual_block.1} parent=0 // loop_footer
    %s16 = sadd.s32 1, %s12
  $region7: #{residual_block.1} parent=0 // loop_footer_branch
    %11 = sbr.rel target = $region3
  $region8: #{residual_block.1} parent=0 // loop_exit
    _

</llo_original>
